<compile_context>
chip_gen: v7x
topology: tpu7x:2x2x1
jax: 0.10.0
libtpu: 0.0.40
codegen_flags: <defaults>
</compile_context>

<pallas_src>
import functools

import jax
import jax.numpy as jnp
import numpy as np
from jax import lax
from jax.experimental import pallas as pl
from jax.experimental.pallas import tpu as pltpu


def _ceil_to(x, m):
    return ((x + m - 1) // m) * m


# ----------------------------- fused Pallas kernel -------------------------

def _gcn_fused_kernel(x_ref, m_ref, w_ref, b_ref, o_ref, h_ref, *,
                      C, KP, C_OUT, NB):
    """One (time-tile, node-block) grid step.

    x_ref : (C, Vp, Tt)      activations, ALL nodes, lanes = fused batch*time
    m_ref : (NB*KP, Vp)      node-major augmented hop rows for this node block;
                             per node: [identity, (A_s^T)^k ..., zero padding]
    w_ref : (C_OUT, C*KP)    1x1-conv weight, columns in (c, slot) order
    b_ref : (C_OUT, 1)       bias
    o_ref : (NB*C_OUT, Tt)   output tile, row = node_local*C_OUT + co
    h_ref : (C, NB*KP, Tt)   pivot scratch: per-channel diffusion results
    """
    Tt = o_ref.shape[-1]
    m = m_ref[...]                                       # resident hop rows

    # ---- phase 1: diffusion.  One matmul per channel covers the identity
    # slot and every hop of every support for all nodes of this block
    # (M = NB*KP, K = Vp, N = Tt).  h_ref[c] = ... is a contiguous,
    # vreg-aligned store -- no strided scatter.
    def _diffuse(c, carry):
        hop = jnp.dot(m, x_ref[c], preferred_element_type=jnp.float32)
        h_ref[c] = hop.astype(h_ref.dtype)
        return carry

    lax.fori_loop(0, C, _diffuse, 0, unroll=min(C, 4))

    # ---- phase 2: 1x1 conv.  Per node the (C*KP, Tt) operand is C aligned
    # (KP=8, Tt) sublane blocks (whole-vreg loads, contraction depth C*KP);
    # the bias broadcast is hoisted out of the loop.  The loop bound is the
    # node block (<=32), so static unrolling stays small.
    w = w_ref[...]
    bias_tile = jnp.broadcast_to(b_ref[...], (C_OUT, Tt))

    for wl in range(NB):
        slab = h_ref[:, wl * KP:(wl + 1) * KP, :]        # (C, KP, Tt), aligned
        slab = slab.reshape(C * KP, Tt)                  # free: KP == sublane tile
        acc = jnp.dot(w, slab, preferred_element_type=jnp.float32) + bias_tile
        o_ref[wl * C_OUT:(wl + 1) * C_OUT, :] = acc.astype(o_ref.dtype)


# ------------------------------ module forward -----------------------------

def gcn_forward(x, support, weight, bias, order=2, tile_t=256, node_block=32):
    """Matches gcn.forward: diffusion hops, channel concat, 1x1 conv (+bias).

    x: (N, C, V, L) f32; support: list of (V, V); weight: (C_out, C_tot);
    bias: (C_out,), with C_tot = (order*len(support)+1)*C.
    """
    n, c_in, v, l = x.shape
    s_len = len(support)
    k_slots = order * s_len + 1
    c_out, c_tot = weight.shape
    assert c_tot == k_slots * c_in
    assert tile_t % 128 == 0

    f32 = jnp.float32
    kp = _ceil_to(k_slots, 8)               # slots per node, padded to sublane tile
    nb = min(node_block, _ceil_to(v, 8))    # nodes per grid step (multiple of 8)
    vp = _ceil_to(v, nb)                    # padded node count
    t_total = n * l
    t_pad = _ceil_to(t_total, tile_t)

    # --- activations -> (C, Vp, T) with the big fused batch*time axis on lanes
    x_cvt = jnp.transpose(x, (1, 2, 0, 3)).reshape(c_in, v, t_total).astype(f32)
    x_cvt = jnp.pad(x_cvt, ((0, 0), (0, vp - v), (0, t_pad - t_total)))

    # --- node-major augmented hop stack: per node, KP rows =
    #     [identity, (A_s^T)^1, ..., (A_s^T)^order (per support), zero pad]
    blocks = []
    for a in support:
        at = jnp.pad(jnp.transpose(a).astype(f32), ((0, vp - v), (0, vp - v)))
        p = at
        blocks.append(p)
        for _ in range(order - 1):
            p = jnp.dot(p, at)
            blocks.append(p)
    slot_mats = [jnp.eye(vp, dtype=f32)] + blocks
    slot_mats += [jnp.zeros((vp, vp), f32)] * (kp - k_slots)
    m_aug = jnp.transpose(jnp.stack(slot_mats, axis=0), (1, 0, 2))  # (Vp, KP, Vp)
    m_aug = m_aug.reshape(vp * kp, vp)                              # row = w*KP + slot

    # --- conv weight columns from PyTorch's (slot, c) concat order to the
    #     kernel's (c, slot[padded]) scratch-row order
    w_k = weight.reshape(c_out, k_slots, c_in).astype(f32)
    w_k = jnp.transpose(w_k, (0, 2, 1))                             # (co, c, slot)
    w_k = jnp.pad(w_k, ((0, 0), (0, 0), (0, kp - k_slots)))
    w_k = w_k.reshape(c_out, c_in * kp)
    bias_col = bias.astype(f32)[:, None]

    grid = (t_pad // tile_t, vp // nb)       # (time tiles, node blocks)

    kernel = functools.partial(_gcn_fused_kernel, C=c_in, KP=kp,
                               C_OUT=c_out, NB=nb)

    flops = (2 * c_in * kp * vp * vp * t_pad            # diffusion (incl. id/pad rows)
             + 2 * c_out * c_in * kp * vp * t_pad)      # 1x1 conv
    bytes_accessed = 4 * (x_cvt.size + m_aug.size * grid[0] + w_k.size
                          + bias_col.size + vp * c_out * t_pad)

    # Per-generation VMEM limit with headroom (~48 MiB on v7x, more on v5e/v6e).
    try:
        cap = getattr(pltpu.get_tpu_info(), "vmem_capacity_bytes",
                      128 * 1024 * 1024)
        vmem_limit = min(int(cap) * 3 // 4, 100 * 1024 * 1024)
    except Exception:  # pragma: no cover - conservative fallback
        vmem_limit = 48 * 1024 * 1024

    o_flat = pl.pallas_call(
        kernel,
        out_shape=jax.ShapeDtypeStruct((vp * c_out, t_pad), f32),
        grid=grid,
        in_specs=[
            # activations: block index constant across the node-block axis, so
            # the tile is DMA'd once per time tile and stays resident.
            pl.BlockSpec((c_in, vp, tile_t), lambda jt, jw: (0, 0, jt)),
            # node-major augmented hop rows for the current node block.
            pl.BlockSpec((nb * kp, vp), lambda jt, jw: (jw, 0)),
            # conv weight / bias: constant blocks, fetched once, resident.
            pl.BlockSpec((c_out, c_in * kp), lambda jt, jw: (0, 0)),
            pl.BlockSpec((c_out, 1), lambda jt, jw: (0, 0)),
        ],
        out_specs=pl.BlockSpec((nb * c_out, tile_t), lambda jt, jw: (jw, jt)),
        scratch_shapes=[pltpu.VMEM((c_in, nb * kp, tile_t), jnp.float32)],
        compiler_params=pltpu.CompilerParams(
            dimension_semantics=("parallel", "parallel"),
            vmem_limit_bytes=vmem_limit),
        cost_estimate=pl.CostEstimate(
            flops=flops, transcendentals=0, bytes_accessed=bytes_accessed),
    )(x_cvt, m_aug, w_k, bias_col)

    # Rows are node-major (node, co), columns are the fused (batch, time) axis,
    # so only a slice + reshape + one final transpose is needed (done by XLA;
    # in the full gwnet this would be fused into the consumer).
    o = o_flat[: v * c_out, :t_total].reshape(v, c_out, n, l)
    o = jnp.transpose(o, (2, 1, 0, 3))
    # F.dropout(h, p, training=False) is identity (inference semantics).
    # TODO(synk): training-mode stochastic dropout not implemented.
    return o


def gcn_reference(x, support, weight, bias, order=2):
    """Pure-JAX reference mirroring the PyTorch code (for correctness checks)."""
    out = [x]
    for a in support:
        x1 = jnp.einsum('ncvl,vw->ncwl', x, a)
        out.append(x1)
        for _ in range(2, order + 1):
            x2 = jnp.einsum('ncvl,vw->ncwl', x1, a)
            out.append(x2)
            x1 = x2
    h = jnp.concatenate(out, axis=1)
    return jnp.einsum('oc,ncvl->novl', weight, h) + bias[None, :, None, None]


# ---------------------------------- main ------------------------------------

if __name__ == "__main__":
    N, C_IN, V, L = 2, 4, 8, 256             # fused T = N*L = 512 -> 2 time tiles
    SUPPORT_LEN, ORDER, C_OUT = 3, 2, 8
    C_TOT = (ORDER * SUPPORT_LEN + 1) * C_IN  # 28

    key = jax.random.PRNGKey(0)
    kx, ka, kw, kb = jax.random.split(key, 4)

    x = jax.random.normal(kx, (N, C_IN, V, L), dtype=jnp.float32)
    adj_keys = jax.random.split(ka, SUPPORT_LEN)
    support = [
        jax.nn.softmax(jax.random.normal(k, (V, V), dtype=jnp.float32), axis=-1)
        for k in adj_keys
    ]
    # Conv2d(C_TOT, C_OUT, kernel_size=(1,1), bias=True): weight (Cout,Ctot,1,1)
    # squeezed to (Cout, Ctot). Deterministic synthetic init (not a checkpoint).
    weight = jax.random.normal(kw, (C_OUT, C_TOT), dtype=jnp.float32) * 0.1
    bias = jax.random.normal(kb, (C_OUT,), dtype=jnp.float32) * 0.1

    fwd = jax.jit(functools.partial(gcn_forward, order=ORDER))
    out = jax.block_until_ready(fwd(x, support, weight, bias))

    ref = gcn_reference(x, support, weight, bias, order=ORDER)
    assert out.shape == (N, C_OUT, V, L), out.shape
    np.testing.assert_allclose(np.asarray(out), np.asarray(ref),
                               rtol=1e-4, atol=1e-5)

    print("KERNEL_OK")
</pallas_src>

<mosaic_0001>
module attributes {stable_mosaic.version = 11 : i64} {
  func.func @_gcn_fused_kernel(%arg0: i32, %arg1: i32, %arg2: memref<4x8x256xf32, #tpu.memory_space<vmem>>, %arg3: memref<64x8xf32, #tpu.memory_space<vmem>>, %arg4: memref<8x32xf32, #tpu.memory_space<vmem>>, %arg5: memref<8x1xf32, #tpu.memory_space<vmem>>, %arg6: memref<64x256xf32, #tpu.memory_space<vmem>>, %arg7: memref<4x64x256xf32, #tpu.memory_space<vmem>>) attributes {dimension_semantics = [#tpu.dimension_semantics<parallel>, #tpu.dimension_semantics<parallel>], iteration_bounds = array<i64: 2, 1>, scalar_prefetch = 0 : i64, scratch_operands = 1 : i64, tpu.core_type = #tpu.core_type<tc>, window_params = [{transform_indices = @transform_0, window_bounds = array<i64: 4, 8, 256>}, {transform_indices = @transform_1, window_bounds = array<i64: 64, 8>}, {pipeline_mode = #tpu.pipeline_mode<synchronous>, transform_indices = @transform_2, window_bounds = array<i64: 8, 32>}, {pipeline_mode = #tpu.pipeline_mode<synchronous>, transform_indices = @transform_3, window_bounds = array<i64: 8, 1>}, {transform_indices = @transform_4, window_bounds = array<i64: 64, 256>}]} {
    %c0 = arith.constant 0 : index
    %c0_0 = arith.constant 0 : index
    %0 = vector.load %arg3[%c0, %c0_0] : memref<64x8xf32, #tpu.memory_space<vmem>>, vector<64x8xf32>
    %c0_i32 = arith.constant 0 : i32
    %1 = arith.index_cast %c0_i32 : i32 to index
    %c0_1 = arith.constant 0 : index
    %c0_2 = arith.constant 0 : index
    %2 = vector.load %arg2[%1, %c0_1, %c0_2] : memref<4x8x256xf32, #tpu.memory_space<vmem>>, vector<1x8x256xf32>
    %3 = vector.shape_cast %2 : vector<1x8x256xf32> to vector<8x256xf32>
    %cst = arith.constant dense<0.000000e+00> : vector<64x256xf32>
    %4 = tpu.matmul %0, %3, %cst {dimension_numbers = #tpu.dot_dimension_numbers<[1], [0], [0], [1], [0, 0, 1, 1], [], []>} : vector<64x8xf32>, vector<8x256xf32>, vector<64x256xf32> -> vector<64x256xf32>
    %5 = arith.index_cast %c0_i32 : i32 to index
    %c0_3 = arith.constant 0 : index
    %c0_4 = arith.constant 0 : index
    %6 = vector.load %arg7[%5, %c0_3, %c0_4] : memref<4x64x256xf32, #tpu.memory_space<vmem>>, vector<1x64x256xf32>
    %7 = vector.shape_cast %6 : vector<1x64x256xf32> to vector<64x256xf32>
    %8 = vector.shape_cast %4 : vector<64x256xf32> to vector<1x64x256xf32>
    tpu.vector_store %arg7[%5, %c0_3, %c0_4], %8 {strides = array<i32>} : memref<4x64x256xf32, #tpu.memory_space<vmem>>, vector<1x64x256xf32>,
    %c1_i32 = arith.constant 1 : i32
    %9 = arith.index_cast %c1_i32 : i32 to index
    %c0_5 = arith.constant 0 : index
    %c0_6 = arith.constant 0 : index
    %10 = vector.load %arg2[%9, %c0_5, %c0_6] : memref<4x8x256xf32, #tpu.memory_space<vmem>>, vector<1x8x256xf32>
    %11 = vector.shape_cast %10 : vector<1x8x256xf32> to vector<8x256xf32>
    %cst_7 = arith.constant dense<0.000000e+00> : vector<64x256xf32>
    %12 = tpu.matmul %0, %11, %cst_7 {dimension_numbers = #tpu.dot_dimension_numbers<[1], [0], [0], [1], [0, 0, 1, 1], [], []>} : vector<64x8xf32>, vector<8x256xf32>, vector<64x256xf32> -> vector<64x256xf32>
    %13 = arith.index_cast %c1_i32 : i32 to index
    %c0_8 = arith.constant 0 : index
    %c0_9 = arith.constant 0 : index
    %14 = vector.load %arg7[%13, %c0_8, %c0_9] : memref<4x64x256xf32, #tpu.memory_space<vmem>>, vector<1x64x256xf32>
    %15 = vector.shape_cast %14 : vector<1x64x256xf32> to vector<64x256xf32>
    %16 = vector.shape_cast %12 : vector<64x256xf32> to vector<1x64x256xf32>
    tpu.vector_store %arg7[%13, %c0_8, %c0_9], %16 {strides = array<i32>} : memref<4x64x256xf32, #tpu.memory_space<vmem>>, vector<1x64x256xf32>,
    %c2_i32 = arith.constant 2 : i32
    %17 = arith.index_cast %c2_i32 : i32 to index
    %c0_10 = arith.constant 0 : index
    %c0_11 = arith.constant 0 : index
    %18 = vector.load %arg2[%17, %c0_10, %c0_11] : memref<4x8x256xf32, #tpu.memory_space<vmem>>, vector<1x8x256xf32>
    %19 = vector.shape_cast %18 : vector<1x8x256xf32> to vector<8x256xf32>
    %cst_12 = arith.constant dense<0.000000e+00> : vector<64x256xf32>
    %20 = tpu.matmul %0, %19, %cst_12 {dimension_numbers = #tpu.dot_dimension_numbers<[1], [0], [0], [1], [0, 0, 1, 1], [], []>} : vector<64x8xf32>, vector<8x256xf32>, vector<64x256xf32> -> vector<64x256xf32>
    %21 = arith.index_cast %c2_i32 : i32 to index
    %c0_13 = arith.constant 0 : index
    %c0_14 = arith.constant 0 : index
    %22 = vector.load %arg7[%21, %c0_13, %c0_14] : memref<4x64x256xf32, #tpu.memory_space<vmem>>, vector<1x64x256xf32>
    %23 = vector.shape_cast %22 : vector<1x64x256xf32> to vector<64x256xf32>
    %24 = vector.shape_cast %20 : vector<64x256xf32> to vector<1x64x256xf32>
    tpu.vector_store %arg7[%21, %c0_13, %c0_14], %24 {strides = array<i32>} : memref<4x64x256xf32, #tpu.memory_space<vmem>>, vector<1x64x256xf32>,
    %c3_i32 = arith.constant 3 : i32
    %25 = arith.index_cast %c3_i32 : i32 to index
    %c0_15 = arith.constant 0 : index
    %c0_16 = arith.constant 0 : index
    %26 = vector.load %arg2[%25, %c0_15, %c0_16] : memref<4x8x256xf32, #tpu.memory_space<vmem>>, vector<1x8x256xf32>
    %27 = vector.shape_cast %26 : vector<1x8x256xf32> to vector<8x256xf32>
    %cst_17 = arith.constant dense<0.000000e+00> : vector<64x256xf32>
    %28 = tpu.matmul %0, %27, %cst_17 {dimension_numbers = #tpu.dot_dimension_numbers<[1], [0], [0], [1], [0, 0, 1, 1], [], []>} : vector<64x8xf32>, vector<8x256xf32>, vector<64x256xf32> -> vector<64x256xf32>
    %29 = arith.index_cast %c3_i32 : i32 to index
    %c0_18 = arith.constant 0 : index
    %c0_19 = arith.constant 0 : index
    %30 = vector.load %arg7[%29, %c0_18, %c0_19] : memref<4x64x256xf32, #tpu.memory_space<vmem>>, vector<1x64x256xf32>
    %31 = vector.shape_cast %30 : vector<1x64x256xf32> to vector<64x256xf32>
    %32 = vector.shape_cast %28 : vector<64x256xf32> to vector<1x64x256xf32>
    tpu.vector_store %arg7[%29, %c0_18, %c0_19], %32 {strides = array<i32>} : memref<4x64x256xf32, #tpu.memory_space<vmem>>, vector<1x64x256xf32>,
    %c4_i32 = arith.constant 4 : i32
    %c0_20 = arith.constant 0 : index
    %c0_21 = arith.constant 0 : index
    %33 = vector.load %arg4[%c0_20, %c0_21] : memref<8x32xf32, #tpu.memory_space<vmem>>, vector<8x32xf32>
    %c0_22 = arith.constant 0 : index
    %c0_23 = arith.constant 0 : index
    %34 = vector.load %arg5[%c0_22, %c0_23] : memref<8x1xf32, #tpu.memory_space<vmem>>, vector<8x1xf32>
    %35 = vector.shape_cast %34 : vector<8x1xf32> to vector<8x1xf32>
    %36 = vector.broadcast %35 : vector<8x1xf32> to vector<8x256xf32>
    %c0_24 = arith.constant 0 : index
    %c0_25 = arith.constant 0 : index
    %c0_26 = arith.constant 0 : index
    %37 = vector.load %arg7[%c0_24, %c0_25, %c0_26] : memref<4x64x256xf32, #tpu.memory_space<vmem>>, vector<4x8x256xf32>
    %38 = vector.shape_cast %37 : vector<4x8x256xf32> to vector<32x256xf32>
    %cst_27 = arith.constant dense<0.000000e+00> : vector<8x256xf32>
    %39 = tpu.matmul %33, %38, %cst_27 {dimension_numbers = #tpu.dot_dimension_numbers<[1], [0], [0], [1], [0, 0, 1, 1], [], []>} : vector<8x32xf32>, vector<32x256xf32>, vector<8x256xf32> -> vector<8x256xf32>
    %40 = arith.addf %39, %36 : vector<8x256xf32>
    %c0_28 = arith.constant 0 : index
    %c0_29 = arith.constant 0 : index
    %41 = vector.load %arg6[%c0_28, %c0_29] : memref<64x256xf32, #tpu.memory_space<vmem>>, vector<8x256xf32>
    tpu.vector_store %arg6[%c0_28, %c0_29], %40 {strides = array<i32>} : memref<64x256xf32, #tpu.memory_space<vmem>>, vector<8x256xf32>,
    %c0_30 = arith.constant 0 : index
    %c8 = arith.constant 8 : index
    %c0_31 = arith.constant 0 : index
    %42 = vector.load %arg7[%c0_30, %c8, %c0_31] : memref<4x64x256xf32, #tpu.memory_space<vmem>>, vector<4x8x256xf32>
    %43 = vector.shape_cast %42 : vector<4x8x256xf32> to vector<32x256xf32>
    %cst_32 = arith.constant dense<0.000000e+00> : vector<8x256xf32>
    %44 = tpu.matmul %33, %43, %cst_32 {dimension_numbers = #tpu.dot_dimension_numbers<[1], [0], [0], [1], [0, 0, 1, 1], [], []>} : vector<8x32xf32>, vector<32x256xf32>, vector<8x256xf32> -> vector<8x256xf32>
    %45 = arith.addf %44, %36 : vector<8x256xf32>
    %c8_33 = arith.constant 8 : index
    %c0_34 = arith.constant 0 : index
    %46 = vector.load %arg6[%c8_33, %c0_34] : memref<64x256xf32, #tpu.memory_space<vmem>>, vector<8x256xf32>
    tpu.vector_store %arg6[%c8_33, %c0_34], %45 {strides = array<i32>} : memref<64x256xf32, #tpu.memory_space<vmem>>, vector<8x256xf32>,
    %c0_35 = arith.constant 0 : index
    %c16 = arith.constant 16 : index
    %c0_36 = arith.constant 0 : index
    %47 = vector.load %arg7[%c0_35, %c16, %c0_36] : memref<4x64x256xf32, #tpu.memory_space<vmem>>, vector<4x8x256xf32>
    %48 = vector.shape_cast %47 : vector<4x8x256xf32> to vector<32x256xf32>
    %cst_37 = arith.constant dense<0.000000e+00> : vector<8x256xf32>
    %49 = tpu.matmul %33, %48, %cst_37 {dimension_numbers = #tpu.dot_dimension_numbers<[1], [0], [0], [1], [0, 0, 1, 1], [], []>} : vector<8x32xf32>, vector<32x256xf32>, vector<8x256xf32> -> vector<8x256xf32>
    %50 = arith.addf %49, %36 : vector<8x256xf32>
    %c16_38 = arith.constant 16 : index
    %c0_39 = arith.constant 0 : index
    %51 = vector.load %arg6[%c16_38, %c0_39] : memref<64x256xf32, #tpu.memory_space<vmem>>, vector<8x256xf32>
    tpu.vector_store %arg6[%c16_38, %c0_39], %50 {strides = array<i32>} : memref<64x256xf32, #tpu.memory_space<vmem>>, vector<8x256xf32>,
    %c0_40 = arith.constant 0 : index
    %c24 = arith.constant 24 : index
    %c0_41 = arith.constant 0 : index
    %52 = vector.load %arg7[%c0_40, %c24, %c0_41] : memref<4x64x256xf32, #tpu.memory_space<vmem>>, vector<4x8x256xf32>
    %53 = vector.shape_cast %52 : vector<4x8x256xf32> to vector<32x256xf32>
    %cst_42 = arith.constant dense<0.000000e+00> : vector<8x256xf32>
    %54 = tpu.matmul %33, %53, %cst_42 {dimension_numbers = #tpu.dot_dimension_numbers<[1], [0], [0], [1], [0, 0, 1, 1], [], []>} : vector<8x32xf32>, vector<32x256xf32>, vector<8x256xf32> -> vector<8x256xf32>
    %55 = arith.addf %54, %36 : vector<8x256xf32>
    %c24_43 = arith.constant 24 : index
    %c0_44 = arith.constant 0 : index
    %56 = vector.load %arg6[%c24_43, %c0_44] : memref<64x256xf32, #tpu.memory_space<vmem>>, vector<8x256xf32>
    tpu.vector_store %arg6[%c24_43, %c0_44], %55 {strides = array<i32>} : memref<64x256xf32, #tpu.memory_space<vmem>>, vector<8x256xf32>,
    %c0_45 = arith.constant 0 : index
    %c32 = arith.constant 32 : index
    %c0_46 = arith.constant 0 : index
    %57 = vector.load %arg7[%c0_45, %c32, %c0_46] : memref<4x64x256xf32, #tpu.memory_space<vmem>>, vector<4x8x256xf32>
    %58 = vector.shape_cast %57 : vector<4x8x256xf32> to vector<32x256xf32>
    %cst_47 = arith.constant dense<0.000000e+00> : vector<8x256xf32>
    %59 = tpu.matmul %33, %58, %cst_47 {dimension_numbers = #tpu.dot_dimension_numbers<[1], [0], [0], [1], [0, 0, 1, 1], [], []>} : vector<8x32xf32>, vector<32x256xf32>, vector<8x256xf32> -> vector<8x256xf32>
    %60 = arith.addf %59, %36 : vector<8x256xf32>
    %c32_48 = arith.constant 32 : index
    %c0_49 = arith.constant 0 : index
    %61 = vector.load %arg6[%c32_48, %c0_49] : memref<64x256xf32, #tpu.memory_space<vmem>>, vector<8x256xf32>
    tpu.vector_store %arg6[%c32_48, %c0_49], %60 {strides = array<i32>} : memref<64x256xf32, #tpu.memory_space<vmem>>, vector<8x256xf32>,
    %c0_50 = arith.constant 0 : index
    %c40 = arith.constant 40 : index
    %c0_51 = arith.constant 0 : index
    %62 = vector.load %arg7[%c0_50, %c40, %c0_51] : memref<4x64x256xf32, #tpu.memory_space<vmem>>, vector<4x8x256xf32>
    %63 = vector.shape_cast %62 : vector<4x8x256xf32> to vector<32x256xf32>
    %cst_52 = arith.constant dense<0.000000e+00> : vector<8x256xf32>
    %64 = tpu.matmul %33, %63, %cst_52 {dimension_numbers = #tpu.dot_dimension_numbers<[1], [0], [0], [1], [0, 0, 1, 1], [], []>} : vector<8x32xf32>, vector<32x256xf32>, vector<8x256xf32> -> vector<8x256xf32>
    %65 = arith.addf %64, %36 : vector<8x256xf32>
    %c40_53 = arith.constant 40 : index
    %c0_54 = arith.constant 0 : index
    %66 = vector.load %arg6[%c40_53, %c0_54] : memref<64x256xf32, #tpu.memory_space<vmem>>, vector<8x256xf32>
    tpu.vector_store %arg6[%c40_53, %c0_54], %65 {strides = array<i32>} : memref<64x256xf32, #tpu.memory_space<vmem>>, vector<8x256xf32>,
    %c0_55 = arith.constant 0 : index
    %c48 = arith.constant 48 : index
    %c0_56 = arith.constant 0 : index
    %67 = vector.load %arg7[%c0_55, %c48, %c0_56] : memref<4x64x256xf32, #tpu.memory_space<vmem>>, vector<4x8x256xf32>
    %68 = vector.shape_cast %67 : vector<4x8x256xf32> to vector<32x256xf32>
    %cst_57 = arith.constant dense<0.000000e+00> : vector<8x256xf32>
    %69 = tpu.matmul %33, %68, %cst_57 {dimension_numbers = #tpu.dot_dimension_numbers<[1], [0], [0], [1], [0, 0, 1, 1], [], []>} : vector<8x32xf32>, vector<32x256xf32>, vector<8x256xf32> -> vector<8x256xf32>
    %70 = arith.addf %69, %36 : vector<8x256xf32>
    %c48_58 = arith.constant 48 : index
    %c0_59 = arith.constant 0 : index
    %71 = vector.load %arg6[%c48_58, %c0_59] : memref<64x256xf32, #tpu.memory_space<vmem>>, vector<8x256xf32>
    tpu.vector_store %arg6[%c48_58, %c0_59], %70 {strides = array<i32>} : memref<64x256xf32, #tpu.memory_space<vmem>>, vector<8x256xf32>,
    %c0_60 = arith.constant 0 : index
    %c56 = arith.constant 56 : index
    %c0_61 = arith.constant 0 : index
    %72 = vector.load %arg7[%c0_60, %c56, %c0_61] : memref<4x64x256xf32, #tpu.memory_space<vmem>>, vector<4x8x256xf32>
    %73 = vector.shape_cast %72 : vector<4x8x256xf32> to vector<32x256xf32>
    %cst_62 = arith.constant dense<0.000000e+00> : vector<8x256xf32>
    %74 = tpu.matmul %33, %73, %cst_62 {dimension_numbers = #tpu.dot_dimension_numbers<[1], [0], [0], [1], [0, 0, 1, 1], [], []>} : vector<8x32xf32>, vector<32x256xf32>, vector<8x256xf32> -> vector<8x256xf32>
    %75 = arith.addf %74, %36 : vector<8x256xf32>
    %c56_63 = arith.constant 56 : index
    %c0_64 = arith.constant 0 : index
    %76 = vector.load %arg6[%c56_63, %c0_64] : memref<64x256xf32, #tpu.memory_space<vmem>>, vector<8x256xf32>
    tpu.vector_store %arg6[%c56_63, %c0_64], %75 {strides = array<i32>} : memref<64x256xf32, #tpu.memory_space<vmem>>, vector<8x256xf32>,
    return
  }
  func.func @transform_0(%arg0: i32, %arg1: i32) -> (i32, i32, i32) {
    %c0_i32 = arith.constant 0 : i32
    %c0_i32_0 = arith.constant 0 : i32
    %c0_i32_1 = arith.constant 0 : i32
    return %c0_i32, %c0_i32_0, %arg0 : i32, i32, i32
  }
  func.func @transform_1(%arg0: i32, %arg1: i32) -> (i32, i32) {
    %c0_i32 = arith.constant 0 : i32
    %c0_i32_0 = arith.constant 0 : i32
    return %arg1, %c0_i32 : i32, i32
  }
  func.func @transform_2(%arg0: i32, %arg1: i32) -> (i32, i32) {
    %c0_i32 = arith.constant 0 : i32
    %c0_i32_0 = arith.constant 0 : i32
    %c0_i32_1 = arith.constant 0 : i32
    return %c0_i32, %c0_i32_0 : i32, i32
  }
  func.func @transform_3(%arg0: i32, %arg1: i32) -> (i32, i32) {
    %c0_i32 = arith.constant 0 : i32
    %c0_i32_0 = arith.constant 0 : i32
    %c0_i32_1 = arith.constant 0 : i32
    return %c0_i32, %c0_i32_0 : i32, i32
  }
  func.func @transform_4(%arg0: i32, %arg1: i32) -> (i32, i32) {
    %c0_i32 = arith.constant 0 : i32
    return %arg1, %arg0 : i32, i32
  }
}

</mosaic_0001>

<llo_original>
// kernel: gcn_forward.1
$region0: #{gcn_forward.1}
  #allocation0 [shape = 'u32[]', space=smem, size = 0x4, offset = 0x4, fixed_abs, tag = 'smem constant byte address 0x4 - core index']
  #allocation1 [shape = 'u32[144,128]{1,0:T(1,128)}', space=vmem, size = 0x12000, scoped, tag = 'internal scratch']
  #allocation2 [shape = 'f32[4,64,256]{2,1,0:T(8,128)}', space=vmem, size = 0x40000, scoped, tag = 'scratch operand']
  %s0 = inlined_call_operand.vmem [shape: f32[4,8,512], index: 0, kind: input, shape index: {}]
  %s1 = inlined_call_operand.vmem [shape: f32[64,8], index: 1, kind: input, shape index: {}]
  %s2 = inlined_call_operand.vmem [shape: f32[8,32], index: 2, kind: input, shape index: {}]
  %s3 = inlined_call_operand.vmem [shape: f32[8,1], index: 3, kind: input, shape index: {}]
  %s4 = inlined_call_operand.vmem [shape: f32[64,512], index: 4, kind: output, shape index: {}]
  %s5 = sld [smem:[#allocation0]]
  $region91: #{gcn_forward.1} parent=0
    _
  %s7 = ssub.s32 1, %s5
  %s8 = scalar_select 0, %s7, %s5
  $region1: #{gcn_forward.1} parent=0
    #allocation3 [shape = 'u8[65536]{0}', space=vmem, size = 0x10000, scoped, tag = 'input window, operand 0']
    #allocation4 [shape = 'u8[131072]{0}', space=vmem, size = 0x20000, scoped, tag = 'output window, operand 0']
    loop: start=0, step=1, limit=4
    $region2: #{gcn_forward.1} parent=1 // loop_pre_header
      _
    $region3: #{gcn_forward.1} parent=1 // loop_header
      %s10 = sphi 0, %s14
      %p11 = scmp.ge.s32.totalorder %s10, 4
      %s17 = sphi 0, %s29
      %s18 = sphi 0, %s25
      %s19 = sphi 0, %s17
      %s20 = sphi 0, %s18
      %s21 = sphi 0, %s19
      %s22 = sphi 0, %s20
      %s32 = sphi 0, %s34
      %s35 = sphi 0, %s32
      %s36 = sphi 0, %s35
      %s52 = sphi 0, %s36
      %s58 = sphi 0, %s60
      %s61 = sphi 0, %s58
      %s62 = sphi 0, %s61
      %s78 = sphi 0, %s62
      %s82 = sphi 0, %s82
      %s84 = sphi 0, %s82
      %s85 = sphi 0, %s84
      %s99 = sphi 0, %s85
      %s103 = sphi 0, %s103
      %s105 = sphi 0, %s103
      %s106 = sphi 0, %s105
      %s120 = sphi 0, %s106
      %s128 = sphi 0, %s130
      %s131 = sphi 0, %s128
      %s132 = sphi 0, %s131
      %s148 = sphi 0, %s132
    $region4: #{gcn_forward.1} parent=1 // loop_header_branch
      %13 = sbr.rel (%p11) target = $region8
    $region5: #{gcn_forward.1} parent=1 // loop_body
      %s15 = ssub.s32 %s10, 1
      %s16 = ssub.s32 %s10, 2
      %s23 = sadd.s32 1, %s18
      %p24 = scmp.ge.s32.totalorder %s23, 1
      %s25 = scalar_select %p24, 0, %s23
      %s26 = sadd.s32 1, %s17
      %s27 = scalar_select %p24, %s26, %s17
      %p28 = scmp.ge.s32.totalorder %s27, 2
      %s29 = scalar_select %p28, 0, %s27
      %s30 = ssub.s32 %s17, %s29
      %p31 = scmp.eq.s32.totalorder %s30, 0
      %s33 = sadd.s32 %s32, 1
      %s34 = scalar_select %p31, %s32, %s33
      %p37 = pneg %p31
      %p38 = scmp.eq.s32.totalorder %s10, 1
      %p39 = por %p37, %p38
      %p40 = scmp.ne.s32.totalorder %s32, %s35
      %p41 = scmp.eq.s32.totalorder %s10, 0
      %p42 = por %p40, %p41
      %p43 = scmp.ne.s32.totalorder %s32, %s35
      %p44 = scmp.eq.s32.totalorder %s15, 1
      %p45 = por %p43, %p44
      %p46 = scmp.ne.s32.totalorder %s35, %s36
      %p47 = scmp.eq.s32.totalorder %s15, 0
      %p48 = por %p46, %p47
      %p49 = scmp.ne.s32.totalorder %s35, %s36
      %p50 = scmp.eq.s32.totalorder %s16, 1
      %p51 = por %p49, %p50
      %p53 = scmp.ne.s32.totalorder %s36, %s52
      %p54 = scmp.eq.s32.totalorder %s16, 0
      %p55 = por %p53, %p54
      %s56 = ssub.s32 %s18, %s25
      %p57 = scmp.eq.s32.totalorder %s56, 0
      %s59 = sadd.s32 %s58, 1
      %s60 = scalar_select %p57, %s58, %s59
      %p63 = pneg %p57
      %p64 = scmp.eq.s32.totalorder %s10, 1
      %p65 = por %p63, %p64
      %p66 = scmp.ne.s32.totalorder %s58, %s61
      %p67 = scmp.eq.s32.totalorder %s10, 0
      %p68 = por %p66, %p67
      %p69 = scmp.ne.s32.totalorder %s58, %s61
      %p70 = scmp.eq.s32.totalorder %s15, 1
      %p71 = por %p69, %p70
      %p72 = scmp.ne.s32.totalorder %s61, %s62
      %p73 = scmp.eq.s32.totalorder %s15, 0
      %p74 = por %p72, %p73
      %p75 = scmp.ne.s32.totalorder %s61, %s62
      %p76 = scmp.eq.s32.totalorder %s16, 1
      %p77 = por %p75, %p76
      %p79 = scmp.ne.s32.totalorder %s62, %s78
      %p80 = scmp.eq.s32.totalorder %s16, 0
      %p81 = por %p79, %p80
      %s83 = sadd.s32 %s82, 1
      %p86 = scmp.eq.s32.totalorder %s10, 1
      %p87 = scmp.ne.s32.totalorder %s82, %s84
      %p88 = scmp.eq.s32.totalorder %s10, 0
      %p89 = por %p87, %p88
      %p90 = scmp.ne.s32.totalorder %s82, %s84
      %p91 = scmp.eq.s32.totalorder %s15, 1
      %p92 = por %p90, %p91
      %p93 = scmp.ne.s32.totalorder %s84, %s85
      %p94 = scmp.eq.s32.totalorder %s15, 0
      %p95 = por %p93, %p94
      %p96 = scmp.ne.s32.totalorder %s84, %s85
      %p97 = scmp.eq.s32.totalorder %s16, 1
      %p98 = por %p96, %p97
      %p100 = scmp.ne.s32.totalorder %s85, %s99
      %p101 = scmp.eq.s32.totalorder %s16, 0
      %p102 = por %p100, %p101
      %s104 = sadd.s32 %s103, 1
      %p107 = scmp.eq.s32.totalorder %s10, 1
      %p108 = scmp.ne.s32.totalorder %s103, %s105
      %p109 = scmp.eq.s32.totalorder %s10, 0
      %p110 = por %p108, %p109
      %p111 = scmp.ne.s32.totalorder %s103, %s105
      %p112 = scmp.eq.s32.totalorder %s15, 1
      %p113 = por %p111, %p112
      %p114 = scmp.ne.s32.totalorder %s105, %s106
      %p115 = scmp.eq.s32.totalorder %s15, 0
      %p116 = por %p114, %p115
      %p117 = scmp.ne.s32.totalorder %s105, %s106
      %p118 = scmp.eq.s32.totalorder %s16, 1
      %p119 = por %p117, %p118
      %p121 = scmp.ne.s32.totalorder %s106, %s120
      %p122 = scmp.eq.s32.totalorder %s16, 0
      %p123 = por %p121, %p122
      %s124 = ssub.s32 %s18, %s25
      %s125 = ssub.s32 %s17, %s29
      %s126 = sor.u32 %s124, %s125
      %p127 = scmp.eq.s32.totalorder %s126, 0
      %s129 = sadd.s32 %s128, 1
      %s130 = scalar_select %p127, %s128, %s129
      %p133 = pneg %p127
      %p134 = scmp.eq.s32.totalorder %s10, 1
      %p135 = por %p133, %p134
      %p136 = scmp.ne.s32.totalorder %s128, %s131
      %p137 = scmp.eq.s32.totalorder %s10, 0
      %p138 = por %p136, %p137
      %p139 = scmp.ne.s32.totalorder %s128, %s131
      %p140 = scmp.eq.s32.totalorder %s15, 1
      %p141 = por %p139, %p140
      %p142 = scmp.ne.s32.totalorder %s131, %s132
      %p143 = scmp.eq.s32.totalorder %s15, 0
      %p144 = por %p142, %p143
      %p145 = scmp.ne.s32.totalorder %s131, %s132
      %p146 = scmp.eq.s32.totalorder %s16, 1
      %p147 = por %p145, %p146
      %p149 = scmp.ne.s32.totalorder %s132, %s148
      %p150 = scmp.eq.s32.totalorder %s16, 0
      %p151 = por %p149, %p150
      %p152 = scmp.le.s32.totalorder 1, %s10
      %p153 = scmp.lt.s32.totalorder %s10, 3
      %p154 = pnand %p152, %p153
      %p155 = pneg %p154
      // Predicated region
      $region9: #{gcn_forward.1} parent=5 // pred_check
        _
      $region10: #{gcn_forward.1} parent=5 // pred_check_branch
        %157 = sbr.rel (%p154) target = $region12
      $region11: #{gcn_forward.1} parent=5 // pred_region
        %s158 = ssub.s32 %s10, 1
        // Predicated region
        $region13: #{gcn_forward.1} parent=11 // pred_check
          %p159 = pneg %p74
        $region14: #{gcn_forward.1} parent=11 // pred_check_branch
          %161 = sbr.rel (%p159) target = $region16
        $region15: #{gcn_forward.1} parent=11 // pred_region
          %s162 = smul.u32 8, %s20
          %p163 = scmp.lt.s32.totalorder %s162, 7
          %s164 = scalar_select %p163, %s162, 7
          %s165 = smul.addr %s164, 8
          %s166 = scalar_lea.vmem %s1, %s165
          %s167 = smul.u32 8, %s20
        $region16: #{gcn_forward.1} parent=11 // pred_fallthru
          _
        // Predicated region
        $region17: #{gcn_forward.1} parent=11 // pred_check
          %p168 = pneg %p95
        $region18: #{gcn_forward.1} parent=11 // pred_check_branch
          %170 = sbr.rel (%p168) target = $region20
        $region19: #{gcn_forward.1} parent=11 // pred_region
          _
        $region20: #{gcn_forward.1} parent=11 // pred_fallthru
          _
        // Predicated region
        $region21: #{gcn_forward.1} parent=11 // pred_check
          %p171 = pneg %p116
        $region22: #{gcn_forward.1} parent=11 // pred_check_branch
          %173 = sbr.rel (%p171) target = $region24
        $region23: #{gcn_forward.1} parent=11 // pred_region
          _
        $region24: #{gcn_forward.1} parent=11 // pred_fallthru
          _
      $region12: #{gcn_forward.1} parent=5 // pred_fallthru
        _
      %p174 = scmp.lt.s32.totalorder %s10, 2
      // Predicated region
      $region25: #{gcn_forward.1} parent=5 // pred_check
        %p175 = pneg %p174
      $region26: #{gcn_forward.1} parent=5 // pred_check_branch
        %177 = sbr.rel (%p175) target = $region28
      $region27: #{gcn_forward.1} parent=5 // pred_region
        // Predicated region
        $region29: #{gcn_forward.1} parent=27 // pred_check
          %p178 = pneg %p42
        $region30: #{gcn_forward.1} parent=27 // pred_check_branch
          %180 = sbr.rel (%p178) target = $region32
        $region31: #{gcn_forward.1} parent=27 // pred_region
          %s181 = sand.u32 %s32, 1
          %s182 = sand.u32 %s32, 1
          %s183 = smul.addr %s182, 64
          %s184 = scalar_lea.vmem [#allocation3], %s183
          %s185 = smul.u32 2, %s17
          %s186 = smul.addr %s185, 8
          %s187 = scalar_lea.vmem %s0, %s186
          // Predicated region
          $region33: #{gcn_forward.1} parent=31 // pred_check
            _
          $region34: #{gcn_forward.1} parent=31 // pred_check_branch
            %189 = sbr.rel (0) target = $region36
          $region35: #{gcn_forward.1} parent=31 // pred_region
            // Predicated region
            $region37: #{gcn_forward.1} parent=35 // pred_check
              _
            $region38: #{gcn_forward.1} parent=35 // pred_check_branch
              %191 = sbr.rel (0) target = $region40
            $region39: #{gcn_forward.1} parent=35 // pred_region
              loop: start=0, step=1, limit=1
              $region41: #{gcn_forward.1} parent=39 // loop_pre_header
                _
              $region42: #{gcn_forward.1} parent=39 // loop_header
                %s193 = sphi 0, %s197
                %p194 = scmp.ge.s32.totalorder %s193, 1
                %s198 = sphi %s187, %s187
                %s199 = sphi %s184, %s184
              $region43: #{gcn_forward.1} parent=39 // loop_header_branch
                %196 = sbr.rel (%p194) target = $region47
              $region44: #{gcn_forward.1} parent=39 // loop_body
                %v200 = vld [vmem:[%s198] sm:$0xff]
                %201 = vst [vmem:[%s199] sm:$0xff] %v200
                %v202 = vld [vmem:[%s198 + $0x8] sm:$0xff]
                %203 = vst [vmem:[%s199 + $0x8] sm:$0xff] %v202
                %v204 = vld [vmem:[%s198 + $0x20] sm:$0xff]
                %205 = vst [vmem:[%s199 + $0x10] sm:$0xff] %v204
                %v206 = vld [vmem:[%s198 + $0x28] sm:$0xff]
                %207 = vst [vmem:[%s199 + $0x18] sm:$0xff] %v206
                %v208 = vld [vmem:[%s198 + $0x40] sm:$0xff]
                %209 = vst [vmem:[%s199 + $0x20] sm:$0xff] %v208
                %v210 = vld [vmem:[%s198 + $0x48] sm:$0xff]
                %211 = vst [vmem:[%s199 + $0x28] sm:$0xff] %v210
                %v212 = vld [vmem:[%s198 + $0x60] sm:$0xff]
                %213 = vst [vmem:[%s199 + $0x30] sm:$0xff] %v212
                %v214 = vld [vmem:[%s198 + $0x68] sm:$0xff]
                %215 = vst [vmem:[%s199 + $0x38] sm:$0xff] %v214
              $region45: #{gcn_forward.1} parent=39 // loop_footer
                %s197 = sadd.s32 1, %s193
              $region46: #{gcn_forward.1} parent=39 // loop_footer_branch
                %192 = sbr.rel target = $region42
              $region47: #{gcn_forward.1} parent=39 // loop_exit
                _
            $region40: #{gcn_forward.1} parent=35 // pred_fallthru
              _
            // Predicated region
            $region48: #{gcn_forward.1} parent=35 // pred_check
              _
            $region49: #{gcn_forward.1} parent=35 // pred_check_branch
              %217 = sbr.rel target = $region51
            $region50: #{gcn_forward.1} parent=35 // pred_region
              _
            $region51: #{gcn_forward.1} parent=35 // pred_fallthru
              _
          $region36: #{gcn_forward.1} parent=31 // pred_fallthru
            _
          %218 = vnop
        $region32: #{gcn_forward.1} parent=27 // pred_fallthru
          _
      $region28: #{gcn_forward.1} parent=5 // pred_fallthru
        _
      %p219 = scmp.le.s32.totalorder 1, %s10
      %p220 = scmp.lt.s32.totalorder %s10, 3
      %p221 = pnand %p219, %p220
      %p222 = pneg %p221
      // Predicated region
      $region52: #{gcn_forward.1} parent=5 // pred_check
        _
      $region53: #{gcn_forward.1} parent=5 // pred_check_branch
        %224 = sbr.rel (%p221) target = $region55
      $region54: #{gcn_forward.1} parent=5 // pred_region
        %s225 = ssub.s32 %s10, 1
        %s226 = sand.u32 %s35, 1
        %s227 = sand.u32 %s35, 1
        %s228 = smul.addr %s227, 64
        %s229 = scalar_lea.vmem [#allocation3], %s228
        // Predicated region
        $region56: #{gcn_forward.1} parent=54 // pred_check
          %p230 = pneg %p48
        $region57: #{gcn_forward.1} parent=54 // pred_check_branch
          %232 = sbr.rel (%p230) target = $region59
        $region58: #{gcn_forward.1} parent=54 // pred_region
          _
        $region59: #{gcn_forward.1} parent=54 // pred_fallthru
          _
        %s233 = sand.u32 %s35, 1
        %s234 = sand.u32 %s35, 1
        %s235 = smul.addr %s234, 64
        %s236 = scalar_lea.vmem [#allocation3], %s235
        %p237 = pneg %p48
        %p238 = pneg %p45
        %s239 = smul.u32 8, %s20
        %p240 = scmp.lt.s32.totalorder %s239, 7
        %s241 = scalar_select %p240, %s239, 7
        %s242 = smul.addr %s241, 8
        %s243 = scalar_lea.vmem %s1, %s242
        %p244 = pneg %p74
        %p245 = pneg %p71
        %p246 = pneg %p95
        %p247 = pneg %p92
        %p248 = pneg %p116
        %p249 = pneg %p113
        %p250 = pneg %p144
        %p251 = pneg %p141
        %s252 = sand.u32 %s131, 1
        %s253 = sand.u32 %s131, 1
        %s254 = smul.addr %s253, 128
        %s255 = scalar_lea.vmem [#allocation4], %s254
        %s256 = smul.u32 2, %s19
        %s257 = smul.u32 8, %s20
        %p258 = scmp.lt.s32.totalorder %s257, 7
        %s259 = scalar_select %p258, %s257, 7
        %s260 = smul.addr %s259, 8
        %s261 = scalar_lea.vmem %s1, %s260
        %s262 = smul.u32 8, %s20
        %s263 = smul.u32 8, %s20
        %s264 = smul.u32 2, %s19
        %v265 = vld [vmem:[%s261] sm:$0xff]
        %v266 = vld [vmem:[%s261 + $0x8] sm:$0xff]
        %v267 = vld [vmem:[%s261 + $0x10] sm:$0xff]
        %v268 = vld [vmem:[%s261 + $0x18] sm:$0xff]
        %v269 = vld [vmem:[%s261 + $0x20] sm:$0xff]
        %v270 = vld [vmem:[%s261 + $0x28] sm:$0xff]
        %v271 = vld [vmem:[%s261 + $0x30] sm:$0xff]
        %v272 = vld [vmem:[%s261 + $0x38] sm:$0xff]
        %v273 = vld [vmem:[%s229] sm:$0xff]
        %v274 = vld [vmem:[%s229 + $0x8] sm:$0xff]
        %vm275 = vcmask 64512
        %v277 = vsel %vm275, %v265, 0
        %v280 = vsel %vm275, %v266, 0
        %v283 = vsel %vm275, %v267, 0
        %v286 = vsel %vm275, %v268, 0
        %v289 = vsel %vm275, %v269, 0
        %v292 = vsel %vm275, %v270, 0
        %v295 = vsel %vm275, %v271, 0
        %v298 = vsel %vm275, %v272, 0
        %300 = vmatprep.subr.mxu0 %v274
        %301 = vmatpush1.msra.mxu0 %v273
        %302 = vmatprep.subr.mxu0 0.0
        %303 = vmatpush1.msra.mxu0 0.0
        %304 = vmatprep.subr.mxu0 0.0
        %305 = vmatpush1.msra.mxu0 0.0
        %306 = vmatprep.subr.mxu0 0.0
        %307 = vmatpush1.msra.mxu0 0.0
        %308 = vmatprep.subr.mxu0 0.0
        %309 = vmatpush1.msra.mxu0 0.0
        %310 = vmatprep.subr.mxu0 0.0
        %311 = vmatpush1.msra.mxu0 0.0
        %312 = vmatprep.subr.mxu0 0.0
        %313 = vmatpush1.msra.mxu0 0.0
        %314 = vmatprep.subr.mxu0 0.0
        %315 = vmatpush1.msra.mxu0 0.0
        %316 = vmatprep.subr.mxu0 0.0
        %317 = vmatpush1.msra.mxu0 0.0
        %318 = vmatprep.subr.mxu0 0.0
        %319 = vmatpush1.msra.mxu0 0.0
        %320 = vmatprep.subr.mxu0 0.0
        %321 = vmatpush1.msra.mxu0 0.0
        %322 = vmatprep.subr.mxu0 0.0
        %323 = vmatpush1.msra.mxu0 0.0
        %324 = vmatprep.subr.mxu0 0.0
        %325 = vmatpush1.msra.mxu0 0.0
        %326 = vmatprep.subr.mxu0 0.0
        %327 = vmatpush1.msra.mxu0 0.0
        %328 = vmatprep.subr.mxu0 0.0
        %329 = vmatpush1.msra.mxu0 0.0
        %330 = vmatprep.subr.mxu0 0.0
        %331 = vmatpush1.msra.mxu0 0.0
        %332 = vmatprep.subr.mxu0 0.0
        %333 = vmatpush1.msra.mxu0 0.0
        %334 = vmatprep.subr.mxu0 0.0
        %335 = vmatpush1.msra.mxu0 0.0
        %336 = vmatprep.subr.mxu0 0.0
        %337 = vmatpush1.msra.mxu0 0.0
        %338 = vmatprep.subr.mxu0 0.0
        %339 = vmatpush1.msra.mxu0 0.0
        %340 = vmatprep.subr.mxu0 0.0
        %341 = vmatpush1.msra.mxu0 0.0
        %342 = vmatprep.subr.mxu0 0.0
        %343 = vmatpush1.msra.mxu0 0.0
        %344 = vmatprep.subr.mxu0 0.0
        %345 = vmatpush1.msra.mxu0 0.0
        %346 = vmatprep.subr.mxu0 0.0
        %347 = vmatpush1.msra.mxu0 0.0
        %348 = vmatprep.subr.mxu0 0.0
        %349 = vmatpush1.msra.mxu0 0.0
        %350 = vmatprep.subr.mxu0 0.0
        %351 = vmatpush1.msra.mxu0 0.0
        %352 = vmatprep.subr.mxu0 0.0
        %353 = vmatpush1.msra.mxu0 0.0
        %354 = vmatprep.subr.mxu0 0.0
        %355 = vmatpush1.msra.mxu0 0.0
        %356 = vmatprep.subr.mxu0 0.0
        %357 = vmatpush1.msra.mxu0 0.0
        %358 = vmatprep.subr.mxu0 0.0
        %359 = vmatpush1.msra.mxu0 0.0
        %360 = vmatprep.subr.mxu0 0.0
        %361 = vmatpush1.msra.mxu0 0.0
        %362 = vmatprep.subr.mxu0 0.0
        %363 = vmatpush1.msra.mxu0 0.0
        %364 = vmatprep.mubr.f32.mxu0 0.0
        %365 = vmatmul.mubr.f32.gmra.mrb[0].mxu0 %v277
        %v366 = vpop.f32.mrb[0].mxu0
        %v367 = vadd.f32 0.0, %v366
        %v368 = vpop.f32.mrb[0].mxu0
        %v369 = vadd.f32 0.0, %v368
        %370 = vmatprep.mubr.f32.mxu0 0.0
        %371 = vmatmul.mubr.f32.gmra.mrb[0].mxu0 %v280
        %v372 = vpop.f32.mrb[0].mxu0
        %v373 = vadd.f32 0.0, %v372
        %v374 = vpop.f32.mrb[0].mxu0
        %v375 = vadd.f32 0.0, %v374
        %376 = vmatprep.mubr.f32.mxu0 0.0
        %377 = vmatmul.mubr.f32.gmra.mrb[0].mxu0 %v283
        %v378 = vpop.f32.mrb[0].mxu0
        %v379 = vadd.f32 0.0, %v378
        %v380 = vpop.f32.mrb[0].mxu0
        %v381 = vadd.f32 0.0, %v380
        %382 = vmatprep.mubr.f32.mxu0 0.0
        %383 = vmatmul.mubr.f32.gmra.mrb[0].mxu0 %v286
        %v384 = vpop.f32.mrb[0].mxu0
        %v385 = vadd.f32 0.0, %v384
        %v386 = vpop.f32.mrb[0].mxu0
        %v387 = vadd.f32 0.0, %v386
        %388 = vmatprep.mubr.f32.mxu0 0.0
        %389 = vmatmul.mubr.f32.gmra.mrb[0].mxu0 %v289
        %v390 = vpop.f32.mrb[0].mxu0
        %v391 = vadd.f32 0.0, %v390
        %v392 = vpop.f32.mrb[0].mxu0
        %v393 = vadd.f32 0.0, %v392
        %394 = vmatprep.mubr.f32.mxu0 0.0
        %395 = vmatmul.mubr.f32.gmra.mrb[0].mxu0 %v292
        %v396 = vpop.f32.mrb[0].mxu0
        %v397 = vadd.f32 0.0, %v396
        %v398 = vpop.f32.mrb[0].mxu0
        %v399 = vadd.f32 0.0, %v398
        %400 = vmatprep.mubr.f32.mxu0 0.0
        %401 = vmatmul.mubr.f32.gmra.mrb[0].mxu0 %v295
        %v402 = vpop.f32.mrb[0].mxu0
        %v403 = vadd.f32 0.0, %v402
        %v404 = vpop.f32.mrb[0].mxu0
        %v405 = vadd.f32 0.0, %v404
        %406 = vmatprep.mubr.f32.mxu0 0.0
        %407 = vmatmul.mubr.f32.gmra.mrb[0].mxu0 %v298
        %v408 = vpop.f32.mrb[0].mxu0
        %v409 = vadd.f32 0.0, %v408
        %v410 = vpop.f32.mrb[0].mxu0
        %v411 = vadd.f32 0.0, %v410
        %412 = vdwg.mxu0
        %413 = vst [vmem:[#allocation2] sm:$0xff] %v367
        %414 = vst [vmem:[#allocation2 + $0x8] sm:$0xff] %v369
        %415 = vst [vmem:[#allocation2 + $0x10] sm:$0xff] %v373
        %416 = vst [vmem:[#allocation2 + $0x18] sm:$0xff] %v375
        %417 = vst [vmem:[#allocation2 + $0x20] sm:$0xff] %v379
        %418 = vst [vmem:[#allocation2 + $0x28] sm:$0xff] %v381
        %419 = vst [vmem:[#allocation2 + $0x30] sm:$0xff] %v385
        %420 = vst [vmem:[#allocation2 + $0x38] sm:$0xff] %v387
        %421 = vst [vmem:[#allocation2 + $0x40] sm:$0xff] %v391
        %422 = vst [vmem:[#allocation2 + $0x48] sm:$0xff] %v393
        %423 = vst [vmem:[#allocation2 + $0x50] sm:$0xff] %v397
        %424 = vst [vmem:[#allocation2 + $0x58] sm:$0xff] %v399
        %425 = vst [vmem:[#allocation2 + $0x60] sm:$0xff] %v403
        %426 = vst [vmem:[#allocation2 + $0x68] sm:$0xff] %v405
        %427 = vst [vmem:[#allocation2 + $0x70] sm:$0xff] %v409
        %428 = vst [vmem:[#allocation2 + $0x78] sm:$0xff] %v411
        %s429 = scalar_lea.vmem %s229, 16 [#allocation3]
        %v430 = vld [vmem:[%s429] sm:$0xff]
        %v431 = vld [vmem:[%s429 + $0x8] sm:$0xff]
        %432 = vmatprep.subr.mxu0 %v431
        %433 = vmatpush1.msra.mxu0 %v430
        %434 = vmatprep.subr.mxu0 0.0
        %435 = vmatpush1.msra.mxu0 0.0
        %436 = vmatprep.subr.mxu0 0.0
        %437 = vmatpush1.msra.mxu0 0.0
        %438 = vmatprep.subr.mxu0 0.0
        %439 = vmatpush1.msra.mxu0 0.0
        %440 = vmatprep.subr.mxu0 0.0
        %441 = vmatpush1.msra.mxu0 0.0
        %442 = vmatprep.subr.mxu0 0.0
        %443 = vmatpush1.msra.mxu0 0.0
        %444 = vmatprep.subr.mxu0 0.0
        %445 = vmatpush1.msra.mxu0 0.0
        %446 = vmatprep.subr.mxu0 0.0
        %447 = vmatpush1.msra.mxu0 0.0
        %448 = vmatprep.subr.mxu0 0.0
        %449 = vmatpush1.msra.mxu0 0.0
        %450 = vmatprep.subr.mxu0 0.0
        %451 = vmatpush1.msra.mxu0 0.0
        %452 = vmatprep.subr.mxu0 0.0
        %453 = vmatpush1.msra.mxu0 0.0
        %454 = vmatprep.subr.mxu0 0.0
        %455 = vmatpush1.msra.mxu0 0.0
        %456 = vmatprep.subr.mxu0 0.0
        %457 = vmatpush1.msra.mxu0 0.0
        %458 = vmatprep.subr.mxu0 0.0
        %459 = vmatpush1.msra.mxu0 0.0
        %460 = vmatprep.subr.mxu0 0.0
        %461 = vmatpush1.msra.mxu0 0.0
        %462 = vmatprep.subr.mxu0 0.0
        %463 = vmatpush1.msra.mxu0 0.0
        %464 = vmatprep.subr.mxu0 0.0
        %465 = vmatpush1.msra.mxu0 0.0
        %466 = vmatprep.subr.mxu0 0.0
        %467 = vmatpush1.msra.mxu0 0.0
        %468 = vmatprep.subr.mxu0 0.0
        %469 = vmatpush1.msra.mxu0 0.0
        %470 = vmatprep.subr.mxu0 0.0
        %471 = vmatpush1.msra.mxu0 0.0
        %472 = vmatprep.subr.mxu0 0.0
        %473 = vmatpush1.msra.mxu0 0.0
        %474 = vmatprep.subr.mxu0 0.0
        %475 = vmatpush1.msra.mxu0 0.0
        %476 = vmatprep.subr.mxu0 0.0
        %477 = vmatpush1.msra.mxu0 0.0
        %478 = vmatprep.subr.mxu0 0.0
        %479 = vmatpush1.msra.mxu0 0.0
        %480 = vmatprep.subr.mxu0 0.0
        %481 = vmatpush1.msra.mxu0 0.0
        %482 = vmatprep.subr.mxu0 0.0
        %483 = vmatpush1.msra.mxu0 0.0
        %484 = vmatprep.subr.mxu0 0.0
        %485 = vmatpush1.msra.mxu0 0.0
        %486 = vmatprep.subr.mxu0 0.0
        %487 = vmatpush1.msra.mxu0 0.0
        %488 = vmatprep.subr.mxu0 0.0
        %489 = vmatpush1.msra.mxu0 0.0
        %490 = vmatprep.subr.mxu0 0.0
        %491 = vmatpush1.msra.mxu0 0.0
        %492 = vmatprep.subr.mxu0 0.0
        %493 = vmatpush1.msra.mxu0 0.0
        %494 = vmatprep.subr.mxu0 0.0
        %495 = vmatpush1.msra.mxu0 0.0
        %496 = vmatprep.mubr.f32.mxu0 0.0
        %497 = vmatmul.mubr.f32.gmra.mrb[0].mxu0 %v277
        %v498 = vpop.f32.mrb[0].mxu0
        %v499 = vadd.f32 0.0, %v498
        %v500 = vpop.f32.mrb[0].mxu0
        %v501 = vadd.f32 0.0, %v500
        %502 = vmatprep.mubr.f32.mxu0 0.0
        %503 = vmatmul.mubr.f32.gmra.mrb[0].mxu0 %v280
        %v504 = vpop.f32.mrb[0].mxu0
        %v505 = vadd.f32 0.0, %v504
        %v506 = vpop.f32.mrb[0].mxu0
        %v507 = vadd.f32 0.0, %v506
        %508 = vmatprep.mubr.f32.mxu0 0.0
        %509 = vmatmul.mubr.f32.gmra.mrb[0].mxu0 %v283
        %v510 = vpop.f32.mrb[0].mxu0
        %v511 = vadd.f32 0.0, %v510
        %v512 = vpop.f32.mrb[0].mxu0
        %v513 = vadd.f32 0.0, %v512
        %514 = vmatprep.mubr.f32.mxu0 0.0
        %515 = vmatmul.mubr.f32.gmra.mrb[0].mxu0 %v286
        %v516 = vpop.f32.mrb[0].mxu0
        %v517 = vadd.f32 0.0, %v516
        %v518 = vpop.f32.mrb[0].mxu0
        %v519 = vadd.f32 0.0, %v518
        %520 = vmatprep.mubr.f32.mxu0 0.0
        %521 = vmatmul.mubr.f32.gmra.mrb[0].mxu0 %v289
        %v522 = vpop.f32.mrb[0].mxu0
        %v523 = vadd.f32 0.0, %v522
        %v524 = vpop.f32.mrb[0].mxu0
        %v525 = vadd.f32 0.0, %v524
        %526 = vmatprep.mubr.f32.mxu0 0.0
        %527 = vmatmul.mubr.f32.gmra.mrb[0].mxu0 %v292
        %v528 = vpop.f32.mrb[0].mxu0
        %v529 = vadd.f32 0.0, %v528
        %v530 = vpop.f32.mrb[0].mxu0
        %v531 = vadd.f32 0.0, %v530
        %532 = vmatprep.mubr.f32.mxu0 0.0
        %533 = vmatmul.mubr.f32.gmra.mrb[0].mxu0 %v295
        %v534 = vpop.f32.mrb[0].mxu0
        %v535 = vadd.f32 0.0, %v534
        %v536 = vpop.f32.mrb[0].mxu0
        %v537 = vadd.f32 0.0, %v536
        %538 = vmatprep.mubr.f32.mxu0 0.0
        %539 = vmatmul.mubr.f32.gmra.mrb[0].mxu0 %v298
        %v540 = vpop.f32.mrb[0].mxu0
        %v541 = vadd.f32 0.0, %v540
        %v542 = vpop.f32.mrb[0].mxu0
        %v543 = vadd.f32 0.0, %v542
        %544 = vdwg.mxu0
        %s545 = scalar_lea.vmem [#allocation2], 128
        %546 = vst [vmem:[%s545] sm:$0xff] %v499
        %547 = vst [vmem:[%s545 + $0x8] sm:$0xff] %v501
        %548 = vst [vmem:[%s545 + $0x10] sm:$0xff] %v505
        %549 = vst [vmem:[%s545 + $0x18] sm:$0xff] %v507
        %550 = vst [vmem:[%s545 + $0x20] sm:$0xff] %v511
        %551 = vst [vmem:[%s545 + $0x28] sm:$0xff] %v513
        %552 = vst [vmem:[%s545 + $0x30] sm:$0xff] %v517
        %553 = vst [vmem:[%s545 + $0x38] sm:$0xff] %v519
        %554 = vst [vmem:[%s545 + $0x40] sm:$0xff] %v523
        %555 = vst [vmem:[%s545 + $0x48] sm:$0xff] %v525
        %556 = vst [vmem:[%s545 + $0x50] sm:$0xff] %v529
        %557 = vst [vmem:[%s545 + $0x58] sm:$0xff] %v531
        %558 = vst [vmem:[%s545 + $0x60] sm:$0xff] %v535
        %559 = vst [vmem:[%s545 + $0x68] sm:$0xff] %v537
        %560 = vst [vmem:[%s545 + $0x70] sm:$0xff] %v541
        %561 = vst [vmem:[%s545 + $0x78] sm:$0xff] %v543
        %s562 = scalar_lea.vmem %s229, 32 [#allocation3]
        %v563 = vld [vmem:[%s562] sm:$0xff]
        %v564 = vld [vmem:[%s562 + $0x8] sm:$0xff]
        %565 = vmatprep.subr.mxu0 %v564
        %566 = vmatpush1.msra.mxu0 %v563
        %567 = vmatprep.subr.mxu0 0.0
        %568 = vmatpush1.msra.mxu0 0.0
        %569 = vmatprep.subr.mxu0 0.0
        %570 = vmatpush1.msra.mxu0 0.0
        %571 = vmatprep.subr.mxu0 0.0
        %572 = vmatpush1.msra.mxu0 0.0
        %573 = vmatprep.subr.mxu0 0.0
        %574 = vmatpush1.msra.mxu0 0.0
        %575 = vmatprep.subr.mxu0 0.0
        %576 = vmatpush1.msra.mxu0 0.0
        %577 = vmatprep.subr.mxu0 0.0
        %578 = vmatpush1.msra.mxu0 0.0
        %579 = vmatprep.subr.mxu0 0.0
        %580 = vmatpush1.msra.mxu0 0.0
        %581 = vmatprep.subr.mxu0 0.0
        %582 = vmatpush1.msra.mxu0 0.0
        %583 = vmatprep.subr.mxu0 0.0
        %584 = vmatpush1.msra.mxu0 0.0
        %585 = vmatprep.subr.mxu0 0.0
        %586 = vmatpush1.msra.mxu0 0.0
        %587 = vmatprep.subr.mxu0 0.0
        %588 = vmatpush1.msra.mxu0 0.0
        %589 = vmatprep.subr.mxu0 0.0
        %590 = vmatpush1.msra.mxu0 0.0
        %591 = vmatprep.subr.mxu0 0.0
        %592 = vmatpush1.msra.mxu0 0.0
        %593 = vmatprep.subr.mxu0 0.0
        %594 = vmatpush1.msra.mxu0 0.0
        %595 = vmatprep.subr.mxu0 0.0
        %596 = vmatpush1.msra.mxu0 0.0
        %597 = vmatprep.subr.mxu0 0.0
        %598 = vmatpush1.msra.mxu0 0.0
        %599 = vmatprep.subr.mxu0 0.0
        %600 = vmatpush1.msra.mxu0 0.0
        %601 = vmatprep.subr.mxu0 0.0
        %602 = vmatpush1.msra.mxu0 0.0
        %603 = vmatprep.subr.mxu0 0.0
        %604 = vmatpush1.msra.mxu0 0.0
        %605 = vmatprep.subr.mxu0 0.0
        %606 = vmatpush1.msra.mxu0 0.0
        %607 = vmatprep.subr.mxu0 0.0
        %608 = vmatpush1.msra.mxu0 0.0
        %609 = vmatprep.subr.mxu0 0.0
        %610 = vmatpush1.msra.mxu0 0.0
        %611 = vmatprep.subr.mxu0 0.0
        %612 = vmatpush1.msra.mxu0 0.0
        %613 = vmatprep.subr.mxu0 0.0
        %614 = vmatpush1.msra.mxu0 0.0
        %615 = vmatprep.subr.mxu0 0.0
        %616 = vmatpush1.msra.mxu0 0.0
        %617 = vmatprep.subr.mxu0 0.0
        %618 = vmatpush1.msra.mxu0 0.0
        %619 = vmatprep.subr.mxu0 0.0
        %620 = vmatpush1.msra.mxu0 0.0
        %621 = vmatprep.subr.mxu0 0.0
        %622 = vmatpush1.msra.mxu0 0.0
        %623 = vmatprep.subr.mxu0 0.0
        %624 = vmatpush1.msra.mxu0 0.0
        %625 = vmatprep.subr.mxu0 0.0
        %626 = vmatpush1.msra.mxu0 0.0
        %627 = vmatprep.subr.mxu0 0.0
        %628 = vmatpush1.msra.mxu0 0.0
        %629 = vmatprep.mubr.f32.mxu0 0.0
        %630 = vmatmul.mubr.f32.gmra.mrb[0].mxu0 %v277
        %v631 = vpop.f32.mrb[0].mxu0
        %v632 = vadd.f32 0.0, %v631
        %v633 = vpop.f32.mrb[0].mxu0
        %v634 = vadd.f32 0.0, %v633
        %635 = vmatprep.mubr.f32.mxu0 0.0
        %636 = vmatmul.mubr.f32.gmra.mrb[0].mxu0 %v280
        %v637 = vpop.f32.mrb[0].mxu0
        %v638 = vadd.f32 0.0, %v637
        %v639 = vpop.f32.mrb[0].mxu0
        %v640 = vadd.f32 0.0, %v639
        %641 = vmatprep.mubr.f32.mxu0 0.0
        %642 = vmatmul.mubr.f32.gmra.mrb[0].mxu0 %v283
        %v643 = vpop.f32.mrb[0].mxu0
        %v644 = vadd.f32 0.0, %v643
        %v645 = vpop.f32.mrb[0].mxu0
        %v646 = vadd.f32 0.0, %v645
        %647 = vmatprep.mubr.f32.mxu0 0.0
        %648 = vmatmul.mubr.f32.gmra.mrb[0].mxu0 %v286
        %v649 = vpop.f32.mrb[0].mxu0
        %v650 = vadd.f32 0.0, %v649
        %v651 = vpop.f32.mrb[0].mxu0
        %v652 = vadd.f32 0.0, %v651
        %653 = vmatprep.mubr.f32.mxu0 0.0
        %654 = vmatmul.mubr.f32.gmra.mrb[0].mxu0 %v289
        %v655 = vpop.f32.mrb[0].mxu0
        %v656 = vadd.f32 0.0, %v655
        %v657 = vpop.f32.mrb[0].mxu0
        %v658 = vadd.f32 0.0, %v657
        %659 = vmatprep.mubr.f32.mxu0 0.0
        %660 = vmatmul.mubr.f32.gmra.mrb[0].mxu0 %v292
        %v661 = vpop.f32.mrb[0].mxu0
        %v662 = vadd.f32 0.0, %v661
        %v663 = vpop.f32.mrb[0].mxu0
        %v664 = vadd.f32 0.0, %v663
        %665 = vmatprep.mubr.f32.mxu0 0.0
        %666 = vmatmul.mubr.f32.gmra.mrb[0].mxu0 %v295
        %v667 = vpop.f32.mrb[0].mxu0
        %v668 = vadd.f32 0.0, %v667
        %v669 = vpop.f32.mrb[0].mxu0
        %v670 = vadd.f32 0.0, %v669
        %671 = vmatprep.mubr.f32.mxu0 0.0
        %672 = vmatmul.mubr.f32.gmra.mrb[0].mxu0 %v298
        %v673 = vpop.f32.mrb[0].mxu0
        %v674 = vadd.f32 0.0, %v673
        %v675 = vpop.f32.mrb[0].mxu0
        %v676 = vadd.f32 0.0, %v675
        %677 = vdwg.mxu0
        %s678 = scalar_lea.vmem [#allocation2], 256
        %679 = vst [vmem:[%s678] sm:$0xff] %v632
        %680 = vst [vmem:[%s678 + $0x8] sm:$0xff] %v634
        %681 = vst [vmem:[%s678 + $0x10] sm:$0xff] %v638
        %682 = vst [vmem:[%s678 + $0x18] sm:$0xff] %v640
        %683 = vst [vmem:[%s678 + $0x20] sm:$0xff] %v644
        %684 = vst [vmem:[%s678 + $0x28] sm:$0xff] %v646
        %685 = vst [vmem:[%s678 + $0x30] sm:$0xff] %v650
        %686 = vst [vmem:[%s678 + $0x38] sm:$0xff] %v652
        %687 = vst [vmem:[%s678 + $0x40] sm:$0xff] %v656
        %688 = vst [vmem:[%s678 + $0x48] sm:$0xff] %v658
        %689 = vst [vmem:[%s678 + $0x50] sm:$0xff] %v662
        %690 = vst [vmem:[%s678 + $0x58] sm:$0xff] %v664
        %691 = vst [vmem:[%s678 + $0x60] sm:$0xff] %v668
        %692 = vst [vmem:[%s678 + $0x68] sm:$0xff] %v670
        %693 = vst [vmem:[%s678 + $0x70] sm:$0xff] %v674
        %694 = vst [vmem:[%s678 + $0x78] sm:$0xff] %v676
        %s695 = scalar_lea.vmem %s229, 48 [#allocation3]
        %v696 = vld [vmem:[%s695] sm:$0xff]
        %v697 = vld [vmem:[%s695 + $0x8] sm:$0xff]
        %698 = vmatprep.subr.mxu0 %v697
        %699 = vmatpush1.msra.mxu0 %v696
        %700 = vmatprep.subr.mxu0 0.0
        %701 = vmatpush1.msra.mxu0 0.0
        %702 = vmatprep.subr.mxu0 0.0
        %703 = vmatpush1.msra.mxu0 0.0
        %704 = vmatprep.subr.mxu0 0.0
        %705 = vmatpush1.msra.mxu0 0.0
        %706 = vmatprep.subr.mxu0 0.0
        %707 = vmatpush1.msra.mxu0 0.0
        %708 = vmatprep.subr.mxu0 0.0
        %709 = vmatpush1.msra.mxu0 0.0
        %710 = vmatprep.subr.mxu0 0.0
        %711 = vmatpush1.msra.mxu0 0.0
        %712 = vmatprep.subr.mxu0 0.0
        %713 = vmatpush1.msra.mxu0 0.0
        %714 = vmatprep.subr.mxu0 0.0
        %715 = vmatpush1.msra.mxu0 0.0
        %716 = vmatprep.subr.mxu0 0.0
        %717 = vmatpush1.msra.mxu0 0.0
        %718 = vmatprep.subr.mxu0 0.0
        %719 = vmatpush1.msra.mxu0 0.0
        %720 = vmatprep.subr.mxu0 0.0
        %721 = vmatpush1.msra.mxu0 0.0
        %722 = vmatprep.subr.mxu0 0.0
        %723 = vmatpush1.msra.mxu0 0.0
        %724 = vmatprep.subr.mxu0 0.0
        %725 = vmatpush1.msra.mxu0 0.0
        %726 = vmatprep.subr.mxu0 0.0
        %727 = vmatpush1.msra.mxu0 0.0
        %728 = vmatprep.subr.mxu0 0.0
        %729 = vmatpush1.msra.mxu0 0.0
        %730 = vmatprep.subr.mxu0 0.0
        %731 = vmatpush1.msra.mxu0 0.0
        %732 = vmatprep.subr.mxu0 0.0
        %733 = vmatpush1.msra.mxu0 0.0
        %734 = vmatprep.subr.mxu0 0.0
        %735 = vmatpush1.msra.mxu0 0.0
        %736 = vmatprep.subr.mxu0 0.0
        %737 = vmatpush1.msra.mxu0 0.0
        %738 = vmatprep.subr.mxu0 0.0
        %739 = vmatpush1.msra.mxu0 0.0
        %740 = vmatprep.subr.mxu0 0.0
        %741 = vmatpush1.msra.mxu0 0.0
        %742 = vmatprep.subr.mxu0 0.0
        %743 = vmatpush1.msra.mxu0 0.0
        %744 = vmatprep.subr.mxu0 0.0
        %745 = vmatpush1.msra.mxu0 0.0
        %746 = vmatprep.subr.mxu0 0.0
        %747 = vmatpush1.msra.mxu0 0.0
        %748 = vmatprep.subr.mxu0 0.0
        %749 = vmatpush1.msra.mxu0 0.0
        %750 = vmatprep.subr.mxu0 0.0
        %751 = vmatpush1.msra.mxu0 0.0
        %752 = vmatprep.subr.mxu0 0.0
        %753 = vmatpush1.msra.mxu0 0.0
        %754 = vmatprep.subr.mxu0 0.0
        %755 = vmatpush1.msra.mxu0 0.0
        %756 = vmatprep.subr.mxu0 0.0
        %757 = vmatpush1.msra.mxu0 0.0
        %758 = vmatprep.subr.mxu0 0.0
        %759 = vmatpush1.msra.mxu0 0.0
        %760 = vmatprep.subr.mxu0 0.0
        %761 = vmatpush1.msra.mxu0 0.0
        %762 = vmatprep.mubr.f32.mxu0 0.0
        %763 = vmatmul.mubr.f32.gmra.mrb[0].mxu0 %v277
        %v764 = vpop.f32.mrb[0].mxu0
        %v765 = vadd.f32 0.0, %v764
        %v766 = vpop.f32.mrb[0].mxu0
        %v767 = vadd.f32 0.0, %v766
        %768 = vmatprep.mubr.f32.mxu0 0.0
        %769 = vmatmul.mubr.f32.gmra.mrb[0].mxu0 %v280
        %v770 = vpop.f32.mrb[0].mxu0
        %v771 = vadd.f32 0.0, %v770
        %v772 = vpop.f32.mrb[0].mxu0
        %v773 = vadd.f32 0.0, %v772
        %774 = vmatprep.mubr.f32.mxu0 0.0
        %775 = vmatmul.mubr.f32.gmra.mrb[0].mxu0 %v283
        %v776 = vpop.f32.mrb[0].mxu0
        %v777 = vadd.f32 0.0, %v776
        %v778 = vpop.f32.mrb[0].mxu0
        %v779 = vadd.f32 0.0, %v778
        %780 = vmatprep.mubr.f32.mxu0 0.0
        %781 = vmatmul.mubr.f32.gmra.mrb[0].mxu0 %v286
        %v782 = vpop.f32.mrb[0].mxu0
        %v783 = vadd.f32 0.0, %v782
        %v784 = vpop.f32.mrb[0].mxu0
        %v785 = vadd.f32 0.0, %v784
        %786 = vmatprep.mubr.f32.mxu0 0.0
        %787 = vmatmul.mubr.f32.gmra.mrb[0].mxu0 %v289
        %v788 = vpop.f32.mrb[0].mxu0
        %v789 = vadd.f32 0.0, %v788
        %v790 = vpop.f32.mrb[0].mxu0
        %v791 = vadd.f32 0.0, %v790
        %792 = vmatprep.mubr.f32.mxu0 0.0
        %793 = vmatmul.mubr.f32.gmra.mrb[0].mxu0 %v292
        %v794 = vpop.f32.mrb[0].mxu0
        %v795 = vadd.f32 0.0, %v794
        %v796 = vpop.f32.mrb[0].mxu0
        %v797 = vadd.f32 0.0, %v796
        %798 = vmatprep.mubr.f32.mxu0 0.0
        %799 = vmatmul.mubr.f32.gmra.mrb[0].mxu0 %v295
        %v800 = vpop.f32.mrb[0].mxu0
        %v801 = vadd.f32 0.0, %v800
        %v802 = vpop.f32.mrb[0].mxu0
        %v803 = vadd.f32 0.0, %v802
        %804 = vmatprep.mubr.f32.mxu0 0.0
        %805 = vmatmul.mubr.f32.gmra.mrb[0].mxu0 %v298
        %v806 = vpop.f32.mrb[0].mxu0
        %v807 = vadd.f32 0.0, %v806
        %v808 = vpop.f32.mrb[0].mxu0
        %v809 = vadd.f32 0.0, %v808
        %810 = vdwg.mxu0
        %s811 = scalar_lea.vmem [#allocation2], 384
        %812 = vst [vmem:[%s811] sm:$0xff] %v765
        %813 = vst [vmem:[%s811 + $0x8] sm:$0xff] %v767
        %814 = vst [vmem:[%s811 + $0x10] sm:$0xff] %v771
        %815 = vst [vmem:[%s811 + $0x18] sm:$0xff] %v773
        %816 = vst [vmem:[%s811 + $0x20] sm:$0xff] %v777
        %817 = vst [vmem:[%s811 + $0x28] sm:$0xff] %v779
        %818 = vst [vmem:[%s811 + $0x30] sm:$0xff] %v783
        %819 = vst [vmem:[%s811 + $0x38] sm:$0xff] %v785
        %820 = vst [vmem:[%s811 + $0x40] sm:$0xff] %v789
        %821 = vst [vmem:[%s811 + $0x48] sm:$0xff] %v791
        %822 = vst [vmem:[%s811 + $0x50] sm:$0xff] %v795
        %823 = vst [vmem:[%s811 + $0x58] sm:$0xff] %v797
        %824 = vst [vmem:[%s811 + $0x60] sm:$0xff] %v801
        %825 = vst [vmem:[%s811 + $0x68] sm:$0xff] %v803
        %826 = vst [vmem:[%s811 + $0x70] sm:$0xff] %v807
        %827 = vst [vmem:[%s811 + $0x78] sm:$0xff] %v809
        %v828 = vld [vmem:[%s2] sm:$0xff]
        %v829 = vld [vmem:[%s3] sm:$0xff]
        %831 = vset.pattern.permute.xlu0 0
        %832 = vperm.xlu0 %831, %v829
        %v833 = vpop.permute.xlu0 %832
        %v835 = vld [vmem:[#allocation2] sm:$0xff]
        %v836 = vld [vmem:[#allocation2 + $0x8] sm:$0xff]
        %v837 = vld [vmem:[#allocation2 + $0x80] sm:$0xff]
        %v838 = vld [vmem:[#allocation2 + $0x88] sm:$0xff]
        %v839 = vld [vmem:[#allocation2 + $0x100] sm:$0xff]
        %v840 = vld [vmem:[#allocation2 + $0x108] sm:$0xff]
        %v841 = vld [vmem:[#allocation2 + $0x180] sm:$0xff]
        %v842 = vld [vmem:[#allocation2 + $0x188] sm:$0xff]
        %vm843 = vcmask 261120
        %v845 = vsel %vm843, %v828, 0
        %847 = vmatprep.subr.mxu0 %v836
        %848 = vmatpush1.msra.mxu0 %v835
        %849 = vmatprep.subr.mxu0 %v838
        %850 = vmatpush1.msra.mxu0 %v837
        %851 = vmatprep.subr.mxu0 %v840
        %852 = vmatpush1.msra.mxu0 %v839
        %853 = vmatprep.subr.mxu0 %v842
        %854 = vmatpush1.msra.mxu0 %v841
        %855 = vmatprep.subr.mxu0 0.0
        %856 = vmatpush1.msra.mxu0 0.0
        %857 = vmatprep.subr.mxu0 0.0
        %858 = vmatpush1.msra.mxu0 0.0
        %859 = vmatprep.subr.mxu0 0.0
        %860 = vmatpush1.msra.mxu0 0.0
        %861 = vmatprep.subr.mxu0 0.0
        %862 = vmatpush1.msra.mxu0 0.0
        %863 = vmatprep.subr.mxu0 0.0
        %864 = vmatpush1.msra.mxu0 0.0
        %865 = vmatprep.subr.mxu0 0.0
        %866 = vmatpush1.msra.mxu0 0.0
        %867 = vmatprep.subr.mxu0 0.0
        %868 = vmatpush1.msra.mxu0 0.0
        %869 = vmatprep.subr.mxu0 0.0
        %870 = vmatpush1.msra.mxu0 0.0
        %871 = vmatprep.subr.mxu0 0.0
        %872 = vmatpush1.msra.mxu0 0.0
        %873 = vmatprep.subr.mxu0 0.0
        %874 = vmatpush1.msra.mxu0 0.0
        %875 = vmatprep.subr.mxu0 0.0
        %876 = vmatpush1.msra.mxu0 0.0
        %877 = vmatprep.subr.mxu0 0.0
        %878 = vmatpush1.msra.mxu0 0.0
        %879 = vmatprep.subr.mxu0 0.0
        %880 = vmatpush1.msra.mxu0 0.0
        %881 = vmatprep.subr.mxu0 0.0
        %882 = vmatpush1.msra.mxu0 0.0
        %883 = vmatprep.subr.mxu0 0.0
        %884 = vmatpush1.msra.mxu0 0.0
        %885 = vmatprep.subr.mxu0 0.0
        %886 = vmatpush1.msra.mxu0 0.0
        %887 = vmatprep.subr.mxu0 0.0
        %888 = vmatpush1.msra.mxu0 0.0
        %889 = vmatprep.subr.mxu0 0.0
        %890 = vmatpush1.msra.mxu0 0.0
        %891 = vmatprep.subr.mxu0 0.0
        %892 = vmatpush1.msra.mxu0 0.0
        %893 = vmatprep.subr.mxu0 0.0
        %894 = vmatpush1.msra.mxu0 0.0
        %895 = vmatprep.subr.mxu0 0.0
        %896 = vmatpush1.msra.mxu0 0.0
        %897 = vmatprep.subr.mxu0 0.0
        %898 = vmatpush1.msra.mxu0 0.0
        %899 = vmatprep.subr.mxu0 0.0
        %900 = vmatpush1.msra.mxu0 0.0
        %901 = vmatprep.subr.mxu0 0.0
        %902 = vmatpush1.msra.mxu0 0.0
        %903 = vmatprep.subr.mxu0 0.0
        %904 = vmatpush1.msra.mxu0 0.0
        %905 = vmatprep.subr.mxu0 0.0
        %906 = vmatpush1.msra.mxu0 0.0
        %907 = vmatprep.subr.mxu0 0.0
        %908 = vmatpush1.msra.mxu0 0.0
        %909 = vmatprep.subr.mxu0 0.0
        %910 = vmatpush1.msra.mxu0 0.0
        %911 = vmatprep.mubr.f32.mxu0 0.0
        %912 = vmatmul.mubr.f32.gmra.mrb[0].mxu0 %v845
        %v913 = vpop.f32.mrb[0].mxu0
        %v914 = vadd.f32 %v833, %v913
        %v915 = vpop.f32.mrb[0].mxu0
        %v916 = vadd.f32 %v833, %v915
        %917 = vdwg.mxu0
        %918 = vst [vmem:[%s255] sm:$0xff] %v914
        %919 = vst [vmem:[%s255 + $0x8] sm:$0xff] %v916
        %v920 = vld [vmem:[#allocation2 + $0x10] sm:$0xff]
        %v921 = vld [vmem:[#allocation2 + $0x18] sm:$0xff]
        %v922 = vld [vmem:[#allocation2 + $0x90] sm:$0xff]
        %v923 = vld [vmem:[#allocation2 + $0x98] sm:$0xff]
        %v924 = vld [vmem:[#allocation2 + $0x110] sm:$0xff]
        %v925 = vld [vmem:[#allocation2 + $0x118] sm:$0xff]
        %v926 = vld [vmem:[#allocation2 + $0x190] sm:$0xff]
        %v927 = vld [vmem:[#allocation2 + $0x198] sm:$0xff]
        %928 = vmatprep.subr.mxu0 %v921
        %929 = vmatpush1.msra.mxu0 %v920
        %930 = vmatprep.subr.mxu0 %v923
        %931 = vmatpush1.msra.mxu0 %v922
        %932 = vmatprep.subr.mxu0 %v925
        %933 = vmatpush1.msra.mxu0 %v924
        %934 = vmatprep.subr.mxu0 %v927
        %935 = vmatpush1.msra.mxu0 %v926
        %936 = vmatprep.subr.mxu0 0.0
        %937 = vmatpush1.msra.mxu0 0.0
        %938 = vmatprep.subr.mxu0 0.0
        %939 = vmatpush1.msra.mxu0 0.0
        %940 = vmatprep.subr.mxu0 0.0
        %941 = vmatpush1.msra.mxu0 0.0
        %942 = vmatprep.subr.mxu0 0.0
        %943 = vmatpush1.msra.mxu0 0.0
        %944 = vmatprep.subr.mxu0 0.0
        %945 = vmatpush1.msra.mxu0 0.0
        %946 = vmatprep.subr.mxu0 0.0
        %947 = vmatpush1.msra.mxu0 0.0
        %948 = vmatprep.subr.mxu0 0.0
        %949 = vmatpush1.msra.mxu0 0.0
        %950 = vmatprep.subr.mxu0 0.0
        %951 = vmatpush1.msra.mxu0 0.0
        %952 = vmatprep.subr.mxu0 0.0
        %953 = vmatpush1.msra.mxu0 0.0
        %954 = vmatprep.subr.mxu0 0.0
        %955 = vmatpush1.msra.mxu0 0.0
        %956 = vmatprep.subr.mxu0 0.0
        %957 = vmatpush1.msra.mxu0 0.0
        %958 = vmatprep.subr.mxu0 0.0
        %959 = vmatpush1.msra.mxu0 0.0
        %960 = vmatprep.subr.mxu0 0.0
        %961 = vmatpush1.msra.mxu0 0.0
        %962 = vmatprep.subr.mxu0 0.0
        %963 = vmatpush1.msra.mxu0 0.0
        %964 = vmatprep.subr.mxu0 0.0
        %965 = vmatpush1.msra.mxu0 0.0
        %966 = vmatprep.subr.mxu0 0.0
        %967 = vmatpush1.msra.mxu0 0.0
        %968 = vmatprep.subr.mxu0 0.0
        %969 = vmatpush1.msra.mxu0 0.0
        %970 = vmatprep.subr.mxu0 0.0
        %971 = vmatpush1.msra.mxu0 0.0
        %972 = vmatprep.subr.mxu0 0.0
        %973 = vmatpush1.msra.mxu0 0.0
        %974 = vmatprep.subr.mxu0 0.0
        %975 = vmatpush1.msra.mxu0 0.0
        %976 = vmatprep.subr.mxu0 0.0
        %977 = vmatpush1.msra.mxu0 0.0
        %978 = vmatprep.subr.mxu0 0.0
        %979 = vmatpush1.msra.mxu0 0.0
        %980 = vmatprep.subr.mxu0 0.0
        %981 = vmatpush1.msra.mxu0 0.0
        %982 = vmatprep.subr.mxu0 0.0
        %983 = vmatpush1.msra.mxu0 0.0
        %984 = vmatprep.subr.mxu0 0.0
        %985 = vmatpush1.msra.mxu0 0.0
        %986 = vmatprep.subr.mxu0 0.0
        %987 = vmatpush1.msra.mxu0 0.0
        %988 = vmatprep.subr.mxu0 0.0
        %989 = vmatpush1.msra.mxu0 0.0
        %990 = vmatprep.subr.mxu0 0.0
        %991 = vmatpush1.msra.mxu0 0.0
        %992 = vmatprep.mubr.f32.mxu0 0.0
        %993 = vmatmul.mubr.f32.gmra.mrb[0].mxu0 %v845
        %v994 = vpop.f32.mrb[0].mxu0
        %v995 = vadd.f32 %v833, %v994
        %v996 = vpop.f32.mrb[0].mxu0
        %v997 = vadd.f32 %v833, %v996
        %998 = vdwg.mxu0
        %999 = vst [vmem:[%s255 + $0x10] sm:$0xff] %v995
        %1000 = vst [vmem:[%s255 + $0x18] sm:$0xff] %v997
        %v1001 = vld [vmem:[#allocation2 + $0x20] sm:$0xff]
        %v1002 = vld [vmem:[#allocation2 + $0x28] sm:$0xff]
        %v1003 = vld [vmem:[#allocation2 + $0xa0] sm:$0xff]
        %v1004 = vld [vmem:[#allocation2 + $0xa8] sm:$0xff]
        %v1005 = vld [vmem:[#allocation2 + $0x120] sm:$0xff]
        %v1006 = vld [vmem:[#allocation2 + $0x128] sm:$0xff]
        %v1007 = vld [vmem:[#allocation2 + $0x1a0] sm:$0xff]
        %v1008 = vld [vmem:[#allocation2 + $0x1a8] sm:$0xff]
        %1009 = vmatprep.subr.mxu0 %v1002
        %1010 = vmatpush1.msra.mxu0 %v1001
        %1011 = vmatprep.subr.mxu0 %v1004
        %1012 = vmatpush1.msra.mxu0 %v1003
        %1013 = vmatprep.subr.mxu0 %v1006
        %1014 = vmatpush1.msra.mxu0 %v1005
        %1015 = vmatprep.subr.mxu0 %v1008
        %1016 = vmatpush1.msra.mxu0 %v1007
        %1017 = vmatprep.subr.mxu0 0.0
        %1018 = vmatpush1.msra.mxu0 0.0
        %1019 = vmatprep.subr.mxu0 0.0
        %1020 = vmatpush1.msra.mxu0 0.0
        %1021 = vmatprep.subr.mxu0 0.0
        %1022 = vmatpush1.msra.mxu0 0.0
        %1023 = vmatprep.subr.mxu0 0.0
        %1024 = vmatpush1.msra.mxu0 0.0
        %1025 = vmatprep.subr.mxu0 0.0
        %1026 = vmatpush1.msra.mxu0 0.0
        %1027 = vmatprep.subr.mxu0 0.0
        %1028 = vmatpush1.msra.mxu0 0.0
        %1029 = vmatprep.subr.mxu0 0.0
        %1030 = vmatpush1.msra.mxu0 0.0
        %1031 = vmatprep.subr.mxu0 0.0
        %1032 = vmatpush1.msra.mxu0 0.0
        %1033 = vmatprep.subr.mxu0 0.0
        %1034 = vmatpush1.msra.mxu0 0.0
        %1035 = vmatprep.subr.mxu0 0.0
        %1036 = vmatpush1.msra.mxu0 0.0
        %1037 = vmatprep.subr.mxu0 0.0
        %1038 = vmatpush1.msra.mxu0 0.0
        %1039 = vmatprep.subr.mxu0 0.0
        %1040 = vmatpush1.msra.mxu0 0.0
        %1041 = vmatprep.subr.mxu0 0.0
        %1042 = vmatpush1.msra.mxu0 0.0
        %1043 = vmatprep.subr.mxu0 0.0
        %1044 = vmatpush1.msra.mxu0 0.0
        %1045 = vmatprep.subr.mxu0 0.0
        %1046 = vmatpush1.msra.mxu0 0.0
        %1047 = vmatprep.subr.mxu0 0.0
        %1048 = vmatpush1.msra.mxu0 0.0
        %1049 = vmatprep.subr.mxu0 0.0
        %1050 = vmatpush1.msra.mxu0 0.0
        %1051 = vmatprep.subr.mxu0 0.0
        %1052 = vmatpush1.msra.mxu0 0.0
        %1053 = vmatprep.subr.mxu0 0.0
        %1054 = vmatpush1.msra.mxu0 0.0
        %1055 = vmatprep.subr.mxu0 0.0
        %1056 = vmatpush1.msra.mxu0 0.0
        %1057 = vmatprep.subr.mxu0 0.0
        %1058 = vmatpush1.msra.mxu0 0.0
        %1059 = vmatprep.subr.mxu0 0.0
        %1060 = vmatpush1.msra.mxu0 0.0
        %1061 = vmatprep.subr.mxu0 0.0
        %1062 = vmatpush1.msra.mxu0 0.0
        %1063 = vmatprep.subr.mxu0 0.0
        %1064 = vmatpush1.msra.mxu0 0.0
        %1065 = vmatprep.subr.mxu0 0.0
        %1066 = vmatpush1.msra.mxu0 0.0
        %1067 = vmatprep.subr.mxu0 0.0
        %1068 = vmatpush1.msra.mxu0 0.0
        %1069 = vmatprep.subr.mxu0 0.0
        %1070 = vmatpush1.msra.mxu0 0.0
        %1071 = vmatprep.subr.mxu0 0.0
        %1072 = vmatpush1.msra.mxu0 0.0
        %1073 = vmatprep.mubr.f32.mxu0 0.0
        %1074 = vmatmul.mubr.f32.gmra.mrb[0].mxu0 %v845
        %v1075 = vpop.f32.mrb[0].mxu0
        %v1076 = vadd.f32 %v833, %v1075
        %v1077 = vpop.f32.mrb[0].mxu0
        %v1078 = vadd.f32 %v833, %v1077
        %1079 = vdwg.mxu0
        %1080 = vst [vmem:[%s255 + $0x20] sm:$0xff] %v1076
        %1081 = vst [vmem:[%s255 + $0x28] sm:$0xff] %v1078
        %v1082 = vld [vmem:[#allocation2 + $0x30] sm:$0xff]
        %v1083 = vld [vmem:[#allocation2 + $0x38] sm:$0xff]
        %v1084 = vld [vmem:[#allocation2 + $0xb0] sm:$0xff]
        %v1085 = vld [vmem:[#allocation2 + $0xb8] sm:$0xff]
        %v1086 = vld [vmem:[#allocation2 + $0x130] sm:$0xff]
        %v1087 = vld [vmem:[#allocation2 + $0x138] sm:$0xff]
        %v1088 = vld [vmem:[#allocation2 + $0x1b0] sm:$0xff]
        %v1089 = vld [vmem:[#allocation2 + $0x1b8] sm:$0xff]
        %1090 = vmatprep.subr.mxu0 %v1083
        %1091 = vmatpush1.msra.mxu0 %v1082
        %1092 = vmatprep.subr.mxu0 %v1085
        %1093 = vmatpush1.msra.mxu0 %v1084
        %1094 = vmatprep.subr.mxu0 %v1087
        %1095 = vmatpush1.msra.mxu0 %v1086
        %1096 = vmatprep.subr.mxu0 %v1089
        %1097 = vmatpush1.msra.mxu0 %v1088
        %1098 = vmatprep.subr.mxu0 0.0
        %1099 = vmatpush1.msra.mxu0 0.0
        %1100 = vmatprep.subr.mxu0 0.0
        %1101 = vmatpush1.msra.mxu0 0.0
        %1102 = vmatprep.subr.mxu0 0.0
        %1103 = vmatpush1.msra.mxu0 0.0
        %1104 = vmatprep.subr.mxu0 0.0
        %1105 = vmatpush1.msra.mxu0 0.0
        %1106 = vmatprep.subr.mxu0 0.0
        %1107 = vmatpush1.msra.mxu0 0.0
        %1108 = vmatprep.subr.mxu0 0.0
        %1109 = vmatpush1.msra.mxu0 0.0
        %1110 = vmatprep.subr.mxu0 0.0
        %1111 = vmatpush1.msra.mxu0 0.0
        %1112 = vmatprep.subr.mxu0 0.0
        %1113 = vmatpush1.msra.mxu0 0.0
        %1114 = vmatprep.subr.mxu0 0.0
        %1115 = vmatpush1.msra.mxu0 0.0
        %1116 = vmatprep.subr.mxu0 0.0
        %1117 = vmatpush1.msra.mxu0 0.0
        %1118 = vmatprep.subr.mxu0 0.0
        %1119 = vmatpush1.msra.mxu0 0.0
        %1120 = vmatprep.subr.mxu0 0.0
        %1121 = vmatpush1.msra.mxu0 0.0
        %1122 = vmatprep.subr.mxu0 0.0
        %1123 = vmatpush1.msra.mxu0 0.0
        %1124 = vmatprep.subr.mxu0 0.0
        %1125 = vmatpush1.msra.mxu0 0.0
        %1126 = vmatprep.subr.mxu0 0.0
        %1127 = vmatpush1.msra.mxu0 0.0
        %1128 = vmatprep.subr.mxu0 0.0
        %1129 = vmatpush1.msra.mxu0 0.0
        %1130 = vmatprep.subr.mxu0 0.0
        %1131 = vmatpush1.msra.mxu0 0.0
        %1132 = vmatprep.subr.mxu0 0.0
        %1133 = vmatpush1.msra.mxu0 0.0
        %1134 = vmatprep.subr.mxu0 0.0
        %1135 = vmatpush1.msra.mxu0 0.0
        %1136 = vmatprep.subr.mxu0 0.0
        %1137 = vmatpush1.msra.mxu0 0.0
        %1138 = vmatprep.subr.mxu0 0.0
        %1139 = vmatpush1.msra.mxu0 0.0
        %1140 = vmatprep.subr.mxu0 0.0
        %1141 = vmatpush1.msra.mxu0 0.0
        %1142 = vmatprep.subr.mxu0 0.0
        %1143 = vmatpush1.msra.mxu0 0.0
        %1144 = vmatprep.subr.mxu0 0.0
        %1145 = vmatpush1.msra.mxu0 0.0
        %1146 = vmatprep.subr.mxu0 0.0
        %1147 = vmatpush1.msra.mxu0 0.0
        %1148 = vmatprep.subr.mxu0 0.0
        %1149 = vmatpush1.msra.mxu0 0.0
        %1150 = vmatprep.subr.mxu0 0.0
        %1151 = vmatpush1.msra.mxu0 0.0
        %1152 = vmatprep.subr.mxu0 0.0
        %1153 = vmatpush1.msra.mxu0 0.0
        %1154 = vmatprep.mubr.f32.mxu0 0.0
        %1155 = vmatmul.mubr.f32.gmra.mrb[0].mxu0 %v845
        %v1156 = vpop.f32.mrb[0].mxu0
        %v1157 = vadd.f32 %v833, %v1156
        %v1158 = vpop.f32.mrb[0].mxu0
        %v1159 = vadd.f32 %v833, %v1158
        %1160 = vdwg.mxu0
        %1161 = vst [vmem:[%s255 + $0x30] sm:$0xff] %v1157
        %1162 = vst [vmem:[%s255 + $0x38] sm:$0xff] %v1159
        %v1163 = vld [vmem:[#allocation2 + $0x40] sm:$0xff]
        %v1164 = vld [vmem:[#allocation2 + $0x48] sm:$0xff]
        %v1165 = vld [vmem:[#allocation2 + $0xc0] sm:$0xff]
        %v1166 = vld [vmem:[#allocation2 + $0xc8] sm:$0xff]
        %v1167 = vld [vmem:[#allocation2 + $0x140] sm:$0xff]
        %v1168 = vld [vmem:[#allocation2 + $0x148] sm:$0xff]
        %v1169 = vld [vmem:[#allocation2 + $0x1c0] sm:$0xff]
        %v1170 = vld [vmem:[#allocation2 + $0x1c8] sm:$0xff]
        %1171 = vmatprep.subr.mxu0 %v1164
        %1172 = vmatpush1.msra.mxu0 %v1163
        %1173 = vmatprep.subr.mxu0 %v1166
        %1174 = vmatpush1.msra.mxu0 %v1165
        %1175 = vmatprep.subr.mxu0 %v1168
        %1176 = vmatpush1.msra.mxu0 %v1167
        %1177 = vmatprep.subr.mxu0 %v1170
        %1178 = vmatpush1.msra.mxu0 %v1169
        %1179 = vmatprep.subr.mxu0 0.0
        %1180 = vmatpush1.msra.mxu0 0.0
        %1181 = vmatprep.subr.mxu0 0.0
        %1182 = vmatpush1.msra.mxu0 0.0
        %1183 = vmatprep.subr.mxu0 0.0
        %1184 = vmatpush1.msra.mxu0 0.0
        %1185 = vmatprep.subr.mxu0 0.0
        %1186 = vmatpush1.msra.mxu0 0.0
        %1187 = vmatprep.subr.mxu0 0.0
        %1188 = vmatpush1.msra.mxu0 0.0
        %1189 = vmatprep.subr.mxu0 0.0
        %1190 = vmatpush1.msra.mxu0 0.0
        %1191 = vmatprep.subr.mxu0 0.0
        %1192 = vmatpush1.msra.mxu0 0.0
        %1193 = vmatprep.subr.mxu0 0.0
        %1194 = vmatpush1.msra.mxu0 0.0
        %1195 = vmatprep.subr.mxu0 0.0
        %1196 = vmatpush1.msra.mxu0 0.0
        %1197 = vmatprep.subr.mxu0 0.0
        %1198 = vmatpush1.msra.mxu0 0.0
        %1199 = vmatprep.subr.mxu0 0.0
        %1200 = vmatpush1.msra.mxu0 0.0
        %1201 = vmatprep.subr.mxu0 0.0
        %1202 = vmatpush1.msra.mxu0 0.0
        %1203 = vmatprep.subr.mxu0 0.0
        %1204 = vmatpush1.msra.mxu0 0.0
        %1205 = vmatprep.subr.mxu0 0.0
        %1206 = vmatpush1.msra.mxu0 0.0
        %1207 = vmatprep.subr.mxu0 0.0
        %1208 = vmatpush1.msra.mxu0 0.0
        %1209 = vmatprep.subr.mxu0 0.0
        %1210 = vmatpush1.msra.mxu0 0.0
        %1211 = vmatprep.subr.mxu0 0.0
        %1212 = vmatpush1.msra.mxu0 0.0
        %1213 = vmatprep.subr.mxu0 0.0
        %1214 = vmatpush1.msra.mxu0 0.0
        %1215 = vmatprep.subr.mxu0 0.0
        %1216 = vmatpush1.msra.mxu0 0.0
        %1217 = vmatprep.subr.mxu0 0.0
        %1218 = vmatpush1.msra.mxu0 0.0
        %1219 = vmatprep.subr.mxu0 0.0
        %1220 = vmatpush1.msra.mxu0 0.0
        %1221 = vmatprep.subr.mxu0 0.0
        %1222 = vmatpush1.msra.mxu0 0.0
        %1223 = vmatprep.subr.mxu0 0.0
        %1224 = vmatpush1.msra.mxu0 0.0
        %1225 = vmatprep.subr.mxu0 0.0
        %1226 = vmatpush1.msra.mxu0 0.0
        %1227 = vmatprep.subr.mxu0 0.0
        %1228 = vmatpush1.msra.mxu0 0.0
        %1229 = vmatprep.subr.mxu0 0.0
        %1230 = vmatpush1.msra.mxu0 0.0
        %1231 = vmatprep.subr.mxu0 0.0
        %1232 = vmatpush1.msra.mxu0 0.0
        %1233 = vmatprep.subr.mxu0 0.0
        %1234 = vmatpush1.msra.mxu0 0.0
        %1235 = vmatprep.mubr.f32.mxu0 0.0
        %1236 = vmatmul.mubr.f32.gmra.mrb[0].mxu0 %v845
        %v1237 = vpop.f32.mrb[0].mxu0
        %v1238 = vadd.f32 %v833, %v1237
        %v1239 = vpop.f32.mrb[0].mxu0
        %v1240 = vadd.f32 %v833, %v1239
        %1241 = vdwg.mxu0
        %1242 = vst [vmem:[%s255 + $0x40] sm:$0xff] %v1238
        %1243 = vst [vmem:[%s255 + $0x48] sm:$0xff] %v1240
        %v1244 = vld [vmem:[#allocation2 + $0x50] sm:$0xff]
        %v1245 = vld [vmem:[#allocation2 + $0x58] sm:$0xff]
        %v1246 = vld [vmem:[#allocation2 + $0xd0] sm:$0xff]
        %v1247 = vld [vmem:[#allocation2 + $0xd8] sm:$0xff]
        %v1248 = vld [vmem:[#allocation2 + $0x150] sm:$0xff]
        %v1249 = vld [vmem:[#allocation2 + $0x158] sm:$0xff]
        %v1250 = vld [vmem:[#allocation2 + $0x1d0] sm:$0xff]
        %v1251 = vld [vmem:[#allocation2 + $0x1d8] sm:$0xff]
        %1252 = vmatprep.subr.mxu0 %v1245
        %1253 = vmatpush1.msra.mxu0 %v1244
        %1254 = vmatprep.subr.mxu0 %v1247
        %1255 = vmatpush1.msra.mxu0 %v1246
        %1256 = vmatprep.subr.mxu0 %v1249
        %1257 = vmatpush1.msra.mxu0 %v1248
        %1258 = vmatprep.subr.mxu0 %v1251
        %1259 = vmatpush1.msra.mxu0 %v1250
        %1260 = vmatprep.subr.mxu0 0.0
        %1261 = vmatpush1.msra.mxu0 0.0
        %1262 = vmatprep.subr.mxu0 0.0
        %1263 = vmatpush1.msra.mxu0 0.0
        %1264 = vmatprep.subr.mxu0 0.0
        %1265 = vmatpush1.msra.mxu0 0.0
        %1266 = vmatprep.subr.mxu0 0.0
        %1267 = vmatpush1.msra.mxu0 0.0
        %1268 = vmatprep.subr.mxu0 0.0
        %1269 = vmatpush1.msra.mxu0 0.0
        %1270 = vmatprep.subr.mxu0 0.0
        %1271 = vmatpush1.msra.mxu0 0.0
        %1272 = vmatprep.subr.mxu0 0.0
        %1273 = vmatpush1.msra.mxu0 0.0
        %1274 = vmatprep.subr.mxu0 0.0
        %1275 = vmatpush1.msra.mxu0 0.0
        %1276 = vmatprep.subr.mxu0 0.0
        %1277 = vmatpush1.msra.mxu0 0.0
        %1278 = vmatprep.subr.mxu0 0.0
        %1279 = vmatpush1.msra.mxu0 0.0
        %1280 = vmatprep.subr.mxu0 0.0
        %1281 = vmatpush1.msra.mxu0 0.0
        %1282 = vmatprep.subr.mxu0 0.0
        %1283 = vmatpush1.msra.mxu0 0.0
        %1284 = vmatprep.subr.mxu0 0.0
        %1285 = vmatpush1.msra.mxu0 0.0
        %1286 = vmatprep.subr.mxu0 0.0
        %1287 = vmatpush1.msra.mxu0 0.0
        %1288 = vmatprep.subr.mxu0 0.0
        %1289 = vmatpush1.msra.mxu0 0.0
        %1290 = vmatprep.subr.mxu0 0.0
        %1291 = vmatpush1.msra.mxu0 0.0
        %1292 = vmatprep.subr.mxu0 0.0
        %1293 = vmatpush1.msra.mxu0 0.0
        %1294 = vmatprep.subr.mxu0 0.0
        %1295 = vmatpush1.msra.mxu0 0.0
        %1296 = vmatprep.subr.mxu0 0.0
        %1297 = vmatpush1.msra.mxu0 0.0
        %1298 = vmatprep.subr.mxu0 0.0
        %1299 = vmatpush1.msra.mxu0 0.0
        %1300 = vmatprep.subr.mxu0 0.0
        %1301 = vmatpush1.msra.mxu0 0.0
        %1302 = vmatprep.subr.mxu0 0.0
        %1303 = vmatpush1.msra.mxu0 0.0
        %1304 = vmatprep.subr.mxu0 0.0
        %1305 = vmatpush1.msra.mxu0 0.0
        %1306 = vmatprep.subr.mxu0 0.0
        %1307 = vmatpush1.msra.mxu0 0.0
        %1308 = vmatprep.subr.mxu0 0.0
        %1309 = vmatpush1.msra.mxu0 0.0
        %1310 = vmatprep.subr.mxu0 0.0
        %1311 = vmatpush1.msra.mxu0 0.0
        %1312 = vmatprep.subr.mxu0 0.0
        %1313 = vmatpush1.msra.mxu0 0.0
        %1314 = vmatprep.subr.mxu0 0.0
        %1315 = vmatpush1.msra.mxu0 0.0
        %1316 = vmatprep.mubr.f32.mxu0 0.0
        %1317 = vmatmul.mubr.f32.gmra.mrb[0].mxu0 %v845
        %v1318 = vpop.f32.mrb[0].mxu0
        %v1319 = vadd.f32 %v833, %v1318
        %v1320 = vpop.f32.mrb[0].mxu0
        %v1321 = vadd.f32 %v833, %v1320
        %1322 = vdwg.mxu0
        %1323 = vst [vmem:[%s255 + $0x50] sm:$0xff] %v1319
        %1324 = vst [vmem:[%s255 + $0x58] sm:$0xff] %v1321
        %v1325 = vld [vmem:[#allocation2 + $0x60] sm:$0xff]
        %v1326 = vld [vmem:[#allocation2 + $0x68] sm:$0xff]
        %v1327 = vld [vmem:[#allocation2 + $0xe0] sm:$0xff]
        %v1328 = vld [vmem:[#allocation2 + $0xe8] sm:$0xff]
        %v1329 = vld [vmem:[#allocation2 + $0x160] sm:$0xff]
        %v1330 = vld [vmem:[#allocation2 + $0x168] sm:$0xff]
        %v1331 = vld [vmem:[#allocation2 + $0x1e0] sm:$0xff]
        %v1332 = vld [vmem:[#allocation2 + $0x1e8] sm:$0xff]
        %1333 = vmatprep.subr.mxu0 %v1326
        %1334 = vmatpush1.msra.mxu0 %v1325
        %1335 = vmatprep.subr.mxu0 %v1328
        %1336 = vmatpush1.msra.mxu0 %v1327
        %1337 = vmatprep.subr.mxu0 %v1330
        %1338 = vmatpush1.msra.mxu0 %v1329
        %1339 = vmatprep.subr.mxu0 %v1332
        %1340 = vmatpush1.msra.mxu0 %v1331
        %1341 = vmatprep.subr.mxu0 0.0
        %1342 = vmatpush1.msra.mxu0 0.0
        %1343 = vmatprep.subr.mxu0 0.0
        %1344 = vmatpush1.msra.mxu0 0.0
        %1345 = vmatprep.subr.mxu0 0.0
        %1346 = vmatpush1.msra.mxu0 0.0
        %1347 = vmatprep.subr.mxu0 0.0
        %1348 = vmatpush1.msra.mxu0 0.0
        %1349 = vmatprep.subr.mxu0 0.0
        %1350 = vmatpush1.msra.mxu0 0.0
        %1351 = vmatprep.subr.mxu0 0.0
        %1352 = vmatpush1.msra.mxu0 0.0
        %1353 = vmatprep.subr.mxu0 0.0
        %1354 = vmatpush1.msra.mxu0 0.0
        %1355 = vmatprep.subr.mxu0 0.0
        %1356 = vmatpush1.msra.mxu0 0.0
        %1357 = vmatprep.subr.mxu0 0.0
        %1358 = vmatpush1.msra.mxu0 0.0
        %1359 = vmatprep.subr.mxu0 0.0
        %1360 = vmatpush1.msra.mxu0 0.0
        %1361 = vmatprep.subr.mxu0 0.0
        %1362 = vmatpush1.msra.mxu0 0.0
        %1363 = vmatprep.subr.mxu0 0.0
        %1364 = vmatpush1.msra.mxu0 0.0
        %1365 = vmatprep.subr.mxu0 0.0
        %1366 = vmatpush1.msra.mxu0 0.0
        %1367 = vmatprep.subr.mxu0 0.0
        %1368 = vmatpush1.msra.mxu0 0.0
        %1369 = vmatprep.subr.mxu0 0.0
        %1370 = vmatpush1.msra.mxu0 0.0
        %1371 = vmatprep.subr.mxu0 0.0
        %1372 = vmatpush1.msra.mxu0 0.0
        %1373 = vmatprep.subr.mxu0 0.0
        %1374 = vmatpush1.msra.mxu0 0.0
        %1375 = vmatprep.subr.mxu0 0.0
        %1376 = vmatpush1.msra.mxu0 0.0
        %1377 = vmatprep.subr.mxu0 0.0
        %1378 = vmatpush1.msra.mxu0 0.0
        %1379 = vmatprep.subr.mxu0 0.0
        %1380 = vmatpush1.msra.mxu0 0.0
        %1381 = vmatprep.subr.mxu0 0.0
        %1382 = vmatpush1.msra.mxu0 0.0
        %1383 = vmatprep.subr.mxu0 0.0
        %1384 = vmatpush1.msra.mxu0 0.0
        %1385 = vmatprep.subr.mxu0 0.0
        %1386 = vmatpush1.msra.mxu0 0.0
        %1387 = vmatprep.subr.mxu0 0.0
        %1388 = vmatpush1.msra.mxu0 0.0
        %1389 = vmatprep.subr.mxu0 0.0
        %1390 = vmatpush1.msra.mxu0 0.0
        %1391 = vmatprep.subr.mxu0 0.0
        %1392 = vmatpush1.msra.mxu0 0.0
        %1393 = vmatprep.subr.mxu0 0.0
        %1394 = vmatpush1.msra.mxu0 0.0
        %1395 = vmatprep.subr.mxu0 0.0
        %1396 = vmatpush1.msra.mxu0 0.0
        %1397 = vmatprep.mubr.f32.mxu0 0.0
        %1398 = vmatmul.mubr.f32.gmra.mrb[0].mxu0 %v845
        %v1399 = vpop.f32.mrb[0].mxu0
        %v1400 = vadd.f32 %v833, %v1399
        %v1401 = vpop.f32.mrb[0].mxu0
        %v1402 = vadd.f32 %v833, %v1401
        %1403 = vdwg.mxu0
        %1404 = vst [vmem:[%s255 + $0x60] sm:$0xff] %v1400
        %1405 = vst [vmem:[%s255 + $0x68] sm:$0xff] %v1402
        %v1406 = vld [vmem:[#allocation2 + $0x70] sm:$0xff]
        %v1407 = vld [vmem:[#allocation2 + $0x78] sm:$0xff]
        %v1408 = vld [vmem:[#allocation2 + $0xf0] sm:$0xff]
        %v1409 = vld [vmem:[#allocation2 + $0xf8] sm:$0xff]
        %v1410 = vld [vmem:[#allocation2 + $0x170] sm:$0xff]
        %v1411 = vld [vmem:[#allocation2 + $0x178] sm:$0xff]
        %v1412 = vld [vmem:[#allocation2 + $0x1f0] sm:$0xff]
        %v1413 = vld [vmem:[#allocation2 + $0x1f8] sm:$0xff]
        %1414 = vmatprep.subr.mxu0 %v1407
        %1415 = vmatpush1.msra.mxu0 %v1406
        %1416 = vmatprep.subr.mxu0 %v1409
        %1417 = vmatpush1.msra.mxu0 %v1408
        %1418 = vmatprep.subr.mxu0 %v1411
        %1419 = vmatpush1.msra.mxu0 %v1410
        %1420 = vmatprep.subr.mxu0 %v1413
        %1421 = vmatpush1.msra.mxu0 %v1412
        %1422 = vmatprep.subr.mxu0 0.0
        %1423 = vmatpush1.msra.mxu0 0.0
        %1424 = vmatprep.subr.mxu0 0.0
        %1425 = vmatpush1.msra.mxu0 0.0
        %1426 = vmatprep.subr.mxu0 0.0
        %1427 = vmatpush1.msra.mxu0 0.0
        %1428 = vmatprep.subr.mxu0 0.0
        %1429 = vmatpush1.msra.mxu0 0.0
        %1430 = vmatprep.subr.mxu0 0.0
        %1431 = vmatpush1.msra.mxu0 0.0
        %1432 = vmatprep.subr.mxu0 0.0
        %1433 = vmatpush1.msra.mxu0 0.0
        %1434 = vmatprep.subr.mxu0 0.0
        %1435 = vmatpush1.msra.mxu0 0.0
        %1436 = vmatprep.subr.mxu0 0.0
        %1437 = vmatpush1.msra.mxu0 0.0
        %1438 = vmatprep.subr.mxu0 0.0
        %1439 = vmatpush1.msra.mxu0 0.0
        %1440 = vmatprep.subr.mxu0 0.0
        %1441 = vmatpush1.msra.mxu0 0.0
        %1442 = vmatprep.subr.mxu0 0.0
        %1443 = vmatpush1.msra.mxu0 0.0
        %1444 = vmatprep.subr.mxu0 0.0
        %1445 = vmatpush1.msra.mxu0 0.0
        %1446 = vmatprep.subr.mxu0 0.0
        %1447 = vmatpush1.msra.mxu0 0.0
        %1448 = vmatprep.subr.mxu0 0.0
        %1449 = vmatpush1.msra.mxu0 0.0
        %1450 = vmatprep.subr.mxu0 0.0
        %1451 = vmatpush1.msra.mxu0 0.0
        %1452 = vmatprep.subr.mxu0 0.0
        %1453 = vmatpush1.msra.mxu0 0.0
        %1454 = vmatprep.subr.mxu0 0.0
        %1455 = vmatpush1.msra.mxu0 0.0
        %1456 = vmatprep.subr.mxu0 0.0
        %1457 = vmatpush1.msra.mxu0 0.0
        %1458 = vmatprep.subr.mxu0 0.0
        %1459 = vmatpush1.msra.mxu0 0.0
        %1460 = vmatprep.subr.mxu0 0.0
        %1461 = vmatpush1.msra.mxu0 0.0
        %1462 = vmatprep.subr.mxu0 0.0
        %1463 = vmatpush1.msra.mxu0 0.0
        %1464 = vmatprep.subr.mxu0 0.0
        %1465 = vmatpush1.msra.mxu0 0.0
        %1466 = vmatprep.subr.mxu0 0.0
        %1467 = vmatpush1.msra.mxu0 0.0
        %1468 = vmatprep.subr.mxu0 0.0
        %1469 = vmatpush1.msra.mxu0 0.0
        %1470 = vmatprep.subr.mxu0 0.0
        %1471 = vmatpush1.msra.mxu0 0.0
        %1472 = vmatprep.subr.mxu0 0.0
        %1473 = vmatpush1.msra.mxu0 0.0
        %1474 = vmatprep.subr.mxu0 0.0
        %1475 = vmatpush1.msra.mxu0 0.0
        %1476 = vmatprep.subr.mxu0 0.0
        %1477 = vmatpush1.msra.mxu0 0.0
        %1478 = vmatprep.mubr.f32.mxu0 0.0
        %1479 = vmatmul.mubr.f32.gmra.mrb[0].mxu0 %v845
        %v1480 = vpop.f32.mrb[0].mxu0
        %v1481 = vadd.f32 %v833, %v1480
        %v1482 = vpop.f32.mrb[0].mxu0
        %v1483 = vadd.f32 %v833, %v1482
        %1484 = vdwg.mxu0
        %1485 = vst [vmem:[%s255 + $0x70] sm:$0xff] %v1481
        %1486 = vst [vmem:[%s255 + $0x78] sm:$0xff] %v1483
        %s1487 = sand.u32 %s131, 1
        %s1488 = sand.u32 %s131, 1
        %s1489 = smul.addr %s1488, 128
        %s1490 = scalar_lea.vmem [#allocation4], %s1489
        // Predicated region
        $region60: #{gcn_forward.1} parent=54 // pred_check
          %p1491 = pneg %p141
        $region61: #{gcn_forward.1} parent=54 // pred_check_branch
          %1493 = sbr.rel (%p1491) target = $region63
        $region62: #{gcn_forward.1} parent=54 // pred_region
          %s1494 = smul.u32 8, %s20
          %s1495 = smul.u32 2, %s19
          %s1496 = smul.addr %s1494, 4
          %s1497 = sadd.s32 %s1495, %s1496
          %s1498 = smul.addr %s1497, 8
          %s1499 = scalar_lea.vmem %s4, %s1498
          // Predicated region
          $region64: #{gcn_forward.1} parent=62 // pred_check
            _
          $region65: #{gcn_forward.1} parent=62 // pred_check_branch
            %1501 = sbr.rel (0) target = $region67
          $region66: #{gcn_forward.1} parent=62 // pred_region
            // Predicated region
            $region68: #{gcn_forward.1} parent=66 // pred_check
              _
            $region69: #{gcn_forward.1} parent=66 // pred_check_branch
              %1503 = sbr.rel (0) target = $region71
            $region70: #{gcn_forward.1} parent=66 // pred_region
              loop: start=0, step=1, limit=1
              $region72: #{gcn_forward.1} parent=70 // loop_pre_header
                _
              $region73: #{gcn_forward.1} parent=70 // loop_header
                %s1505 = sphi 0, %s1509
                %p1506 = scmp.ge.s32.totalorder %s1505, 1
                %s1510 = sphi %s1490, %s1490
                %s1511 = sphi %s1499, %s1499
              $region74: #{gcn_forward.1} parent=70 // loop_header_branch
                %1508 = sbr.rel (%p1506) target = $region78
              $region75: #{gcn_forward.1} parent=70 // loop_body
                %v1512 = vld [vmem:[%s1510] sm:$0xff]
                %1513 = vst [vmem:[%s1511] sm:$0xff] %v1512
                %v1514 = vld [vmem:[%s1510 + $0x8] sm:$0xff]
                %1515 = vst [vmem:[%s1511 + $0x8] sm:$0xff] %v1514
                %v1516 = vld [vmem:[%s1510 + $0x10] sm:$0xff]
                %1517 = vst [vmem:[%s1511 + $0x20] sm:$0xff] %v1516
                %v1518 = vld [vmem:[%s1510 + $0x18] sm:$0xff]
                %1519 = vst [vmem:[%s1511 + $0x28] sm:$0xff] %v1518
                %v1520 = vld [vmem:[%s1510 + $0x20] sm:$0xff]
                %1521 = vst [vmem:[%s1511 + $0x40] sm:$0xff] %v1520
                %v1522 = vld [vmem:[%s1510 + $0x28] sm:$0xff]
                %1523 = vst [vmem:[%s1511 + $0x48] sm:$0xff] %v1522
                %v1524 = vld [vmem:[%s1510 + $0x30] sm:$0xff]
                %1525 = vst [vmem:[%s1511 + $0x60] sm:$0xff] %v1524
                %v1526 = vld [vmem:[%s1510 + $0x38] sm:$0xff]
                %1527 = vst [vmem:[%s1511 + $0x68] sm:$0xff] %v1526
                %v1528 = vld [vmem:[%s1510 + $0x40] sm:$0xff]
                %1529 = vst [vmem:[%s1511 + $0x80] sm:$0xff] %v1528
                %v1530 = vld [vmem:[%s1510 + $0x48] sm:$0xff]
                %1531 = vst [vmem:[%s1511 + $0x88] sm:$0xff] %v1530
                %v1532 = vld [vmem:[%s1510 + $0x50] sm:$0xff]
                %1533 = vst [vmem:[%s1511 + $0xa0] sm:$0xff] %v1532
                %v1534 = vld [vmem:[%s1510 + $0x58] sm:$0xff]
                %1535 = vst [vmem:[%s1511 + $0xa8] sm:$0xff] %v1534
                %v1536 = vld [vmem:[%s1510 + $0x60] sm:$0xff]
                %1537 = vst [vmem:[%s1511 + $0xc0] sm:$0xff] %v1536
                %v1538 = vld [vmem:[%s1510 + $0x68] sm:$0xff]
                %1539 = vst [vmem:[%s1511 + $0xc8] sm:$0xff] %v1538
                %v1540 = vld [vmem:[%s1510 + $0x70] sm:$0xff]
                %1541 = vst [vmem:[%s1511 + $0xe0] sm:$0xff] %v1540
                %v1542 = vld [vmem:[%s1510 + $0x78] sm:$0xff]
                %1543 = vst [vmem:[%s1511 + $0xe8] sm:$0xff] %v1542
              $region76: #{gcn_forward.1} parent=70 // loop_footer
                %s1509 = sadd.s32 1, %s1505
              $region77: #{gcn_forward.1} parent=70 // loop_footer_branch
                %1504 = sbr.rel target = $region73
              $region78: #{gcn_forward.1} parent=70 // loop_exit
                _
            $region71: #{gcn_forward.1} parent=66 // pred_fallthru
              _
            // Predicated region
            $region79: #{gcn_forward.1} parent=66 // pred_check
              _
            $region80: #{gcn_forward.1} parent=66 // pred_check_branch
              %1545 = sbr.rel target = $region82
            $region81: #{gcn_forward.1} parent=66 // pred_region
              _
            $region82: #{gcn_forward.1} parent=66 // pred_fallthru
              _
          $region67: #{gcn_forward.1} parent=62 // pred_fallthru
            _
          %1546 = vnop
        $region63: #{gcn_forward.1} parent=54 // pred_fallthru
          _
      $region55: #{gcn_forward.1} parent=5 // pred_fallthru
        _
      %p1547 = scmp.le.s32.totalorder 2, %s10
      // Predicated region
      $region83: #{gcn_forward.1} parent=5 // pred_check
        %p1548 = pneg %p1547
      $region84: #{gcn_forward.1} parent=5 // pred_check_branch
        %1550 = sbr.rel (%p1548) target = $region86
      $region85: #{gcn_forward.1} parent=5 // pred_region
        %s1551 = ssub.s32 %s10, 2
        // Predicated region
        $region87: #{gcn_forward.1} parent=85 // pred_check
          %p1552 = pneg %p147
        $region88: #{gcn_forward.1} parent=85 // pred_check_branch
          %1554 = sbr.rel (%p1552) target = $region90
        $region89: #{gcn_forward.1} parent=85 // pred_region
          %s1555 = sand.u32 %s132, 1
          %s1556 = sand.u32 %s132, 1
          %s1557 = smul.addr %s1556, 128
          %s1558 = scalar_lea.vmem [#allocation4], %s1557
        $region90: #{gcn_forward.1} parent=85 // pred_fallthru
          _
      $region86: #{gcn_forward.1} parent=5 // pred_fallthru
        _
    $region6: #{gcn_forward.1} parent=1 // loop_footer
      %s14 = sadd.s32 1, %s10
    $region7: #{gcn_forward.1} parent=1 // loop_footer_branch
      %9 = sbr.rel target = $region3
    $region8: #{gcn_forward.1} parent=1 // loop_exit
      _

</llo_original>
